<compile_context>
chip_gen: v7x
topology: tpu7x:2x2x1
jax: 0.10.0
libtpu: 0.0.40
codegen_flags: <defaults>
</compile_context>

<pallas_src>
import jax
import jax.numpy as jnp
from jax.experimental import pallas as pl
from jax.experimental.pallas import tpu as pltpu


def lstm_model_kernel(x_ref, w1i_ref, w1h_ref, b1_ref,
                      w2_ref, b2_ref,
                      wd1_ref, bd1_ref, wd2_ref, bd2_ref,
                      out_ref):
    B, S, I = x_ref.shape
    H = w1h_ref.shape[0]
    G = 4 * H

    # Load recurrent weights once; hoist the b2 broadcast (JAX does not CSE
    # broadcast_in_dim, so a per-step add of (1,4H) would emit S broadcasts).
    w1h = w1h_ref[...]                                     # (H, 4H)
    w2 = w2_ref[...]                                       # (2H, 4H) = [w2i; w2h]
    b2 = jnp.broadcast_to(b2_ref[...], (B, G))

    # Hoisted layer-1 input projection: one (B*S, I) @ (I, 4H) matmul covers
    # all timesteps; b1 folded in.  x stays batch-major -> no wrapper transpose.
    x2d = x_ref[...].reshape(B * S, I)
    xz1 = (jnp.dot(x2d, w1i_ref[...], preferred_element_type=jnp.float32)
           + b1_ref[...]).reshape(B, S, G)

    def cell_from_z(z, c):
        # z: (B, 4H) pre-activation, PyTorch gate order [i, f, g, o].
        # Full-width sigmoid (covers i, f, o lanes) + one tanh for g:
        # 2 EUP passes per cell instead of 4 narrow ones.
        sg = jax.nn.sigmoid(z)
        g_g = jnp.tanh(z[:, 2 * H:3 * H])
        i_g = sg[:, 0:H]
        f_g = sg[:, H:2 * H]
        o_g = sg[:, 3 * H:4 * H]
        c_new = f_g * c + i_g * g_g
        h_new = o_g * jnp.tanh(c_new)
        return h_new, c_new

    h1 = jnp.zeros((B, H), jnp.float32)
    c1 = jnp.zeros((B, H), jnp.float32)
    h2 = jnp.zeros((B, H), jnp.float32)
    c2 = jnp.zeros((B, H), jnp.float32)
    outs = []

    # S is static and tiny -> full unroll: every slice is static and the LLO
    # scheduler sees the whole dependence chain across adjacent steps.
    for t in range(S):
        # LSTM layer 1: only the h-dependent matmul is on the serial chain.
        z1 = xz1[:, t, :] + jnp.dot(h1, w1h, preferred_element_type=jnp.float32)
        h1, c1 = cell_from_z(z1, c1)
        a1 = jnp.maximum(h1, 0.0)                          # relu(out1[:, t])

        # LSTM layer 2: single fused matmul [a1 | h2] @ [w2i; w2h] (K = 2H)
        # instead of two K = H matmuls + add on the critical path.
        ah = jnp.concatenate([a1, h2], axis=1)             # (B, 2H)
        z2 = jnp.dot(ah, w2, preferred_element_type=jnp.float32) + b2
        h2, c2 = cell_from_z(z2, c2)
        outs.append(jnp.maximum(h2, 0.0))                  # relu(out2[:, t])

    # dense1 as ONE (B, S*H) @ (S*H, 128) matmul (PyTorch flatten order is
    # time-major along lanes, which the concat reproduces exactly).
    flat = jnp.concatenate(outs, axis=1)                   # (B, S*H)
    d1 = jnp.maximum(
        jnp.dot(flat, wd1_ref[...], preferred_element_type=jnp.float32)
        + bd1_ref[...], 0.0)                               # relu(dense1)
    d2 = (jnp.dot(d1, wd2_ref[...], preferred_element_type=jnp.float32)
          + bd2_ref[...])
    out_ref[...] = jnp.tanh(d2).astype(out_ref.dtype)      # tanh(dense2)


def lstm_model_forward(x, params):
    """x: (batch, seq_len, input_dim) float32 (batch-major, no transpose);
    returns (batch, pred_len)."""
    w1i, w1h, b1, w2, b2, wd1, bd1, wd2, bd2 = params
    B, S, I = x.shape
    P = wd2.shape[1]

    vmem = pl.BlockSpec(memory_space=pltpu.MemorySpace.VMEM)
    return pl.pallas_call(
        lstm_model_kernel,
        out_shape=jax.ShapeDtypeStruct((B, P), jnp.float32),
        in_specs=[vmem] * 10,
        out_specs=vmem,
    )(x, w1i, w1h, b1, w2, b2, wd1, bd1, wd2, bd2)


def init_params(key, input_dim, hidden, seq_len, pred_len):
    """Deterministic PyTorch-style uniform init.

    Weights stored transposed (in_features, out_features); layer-2 LSTM
    weights pre-stacked as W2 = [w2i; w2h] (2H, 4H) so the kernel does one
    fused matmul per step."""
    ks = jax.random.split(key, 14)

    def u(k, shape, bound):
        return jax.random.uniform(k, shape, jnp.float32, -bound, bound)

    kh = 1.0 / float(hidden) ** 0.5
    # LSTM 1: W_ih (I,4H), W_hh (H,4H), combined bias b_ih + b_hh -> (1,4H)
    w1i = u(ks[0], (input_dim, 4 * hidden), kh)
    w1h = u(ks[1], (hidden, 4 * hidden), kh)
    b1 = u(ks[2], (1, 4 * hidden), kh) + u(ks[3], (1, 4 * hidden), kh)
    # LSTM 2 (pre-stacked): rows [0:H] = W_ih^T, rows [H:2H] = W_hh^T
    w2i = u(ks[4], (hidden, 4 * hidden), kh)
    w2h = u(ks[5], (hidden, 4 * hidden), kh)
    w2 = jnp.concatenate([w2i, w2h], axis=0)
    b2 = u(ks[6], (1, 4 * hidden), kh) + u(ks[7], (1, 4 * hidden), kh)
    # dense1: (H*S -> 128)
    kd1 = 1.0 / float(hidden * seq_len) ** 0.5
    wd1 = u(ks[8], (hidden * seq_len, 128), kd1)
    bd1 = u(ks[9], (1, 128), kd1)
    # dense2: (128 -> pred_len)
    kd2 = 1.0 / 128.0 ** 0.5
    wd2 = u(ks[10], (128, pred_len), kd2)
    bd2 = u(ks[11], (1, pred_len), kd2)
    return (w1i, w1h, b1, w2, b2, wd1, bd1, wd2, bd2)


def reference_forward(x, params):
    """Pure-JAX reference matching PyTorch LSTMmodel.forward with zero states."""
    w1i, w1h, b1, w2, b2, wd1, bd1, wd2, bd2 = params
    B, S, I = x.shape
    H = w1h.shape[0]
    w2i, w2h = w2[:H], w2[H:]

    def cell(x_t, h, c, wi, wh, b):
        z = x_t @ wi + h @ wh + b
        i = jax.nn.sigmoid(z[:, :H])
        f = jax.nn.sigmoid(z[:, H:2 * H])
        g = jnp.tanh(z[:, 2 * H:3 * H])
        o = jax.nn.sigmoid(z[:, 3 * H:])
        c = f * c + i * g
        h = o * jnp.tanh(c)
        return h, c

    h1 = c1 = h2 = c2 = jnp.zeros((B, H), jnp.float32)
    outs = []
    for t in range(S):
        h1, c1 = cell(x[:, t], h1, c1, w1i, w1h, b1)
        a1 = jax.nn.relu(h1)
        h2, c2 = cell(a1, h2, c2, w2i, w2h, b2)
        outs.append(jax.nn.relu(h2))
    flat = jnp.stack(outs, axis=1).reshape(B, S * H)
    d1 = jax.nn.relu(flat @ wd1 + bd1)
    return jnp.tanh(d1 @ wd2 + bd2)


if __name__ == "__main__":
    batch, input_dim, hidden, seq_len, pred_len = 2, 4, 32, 8, 4

    key = jax.random.PRNGKey(0)
    k_x, k_p = jax.random.split(key)
    params = init_params(k_p, input_dim, hidden, seq_len, pred_len)
    x = jax.random.normal(k_x, (batch, seq_len, input_dim), jnp.float32)

    out = jax.block_until_ready(lstm_model_forward(x, params))
    ref = jax.block_until_ready(reference_forward(x, params))

    assert out.shape == (batch, pred_len), out.shape
    # Tolerance covers f32-accumulation reassociation from the fused matmuls
    # (kernel: K=2H and K=S*H single dots; reference: split dots + adds).
    assert jnp.allclose(out, ref, atol=1e-4, rtol=1e-4), (
        f"max abs err = {jnp.max(jnp.abs(out - ref))}")
    print("KERNEL_OK")
</pallas_src>

<mosaic_0001>
module attributes {stable_mosaic.version = 11 : i64} {
  func.func @lstm_model_kernel(%arg0: memref<2x8x4xf32, #tpu.memory_space<vmem>>, %arg1: memref<4x128xf32, #tpu.memory_space<vmem>>, %arg2: memref<32x128xf32, #tpu.memory_space<vmem>>, %arg3: memref<1x128xf32, #tpu.memory_space<vmem>>, %arg4: memref<64x128xf32, #tpu.memory_space<vmem>>, %arg5: memref<1x128xf32, #tpu.memory_space<vmem>>, %arg6: memref<256x128xf32, #tpu.memory_space<vmem>>, %arg7: memref<1x128xf32, #tpu.memory_space<vmem>>, %arg8: memref<128x4xf32, #tpu.memory_space<vmem>>, %arg9: memref<1x4xf32, #tpu.memory_space<vmem>>, %arg10: memref<2x4xf32, #tpu.memory_space<vmem>>) attributes {dimension_semantics = [], scalar_prefetch = 0 : i64, scratch_operands = 0 : i64, tpu.core_type = #tpu.core_type<tc>} {
    %c0 = arith.constant 0 : index
    %c0_0 = arith.constant 0 : index
    %0 = vector.load %arg2[%c0, %c0_0] : memref<32x128xf32, #tpu.memory_space<vmem>>, vector<32x128xf32>
    %c0_1 = arith.constant 0 : index
    %c0_2 = arith.constant 0 : index
    %1 = vector.load %arg4[%c0_1, %c0_2] : memref<64x128xf32, #tpu.memory_space<vmem>>, vector<64x128xf32>
    %c0_3 = arith.constant 0 : index
    %c0_4 = arith.constant 0 : index
    %2 = vector.load %arg5[%c0_3, %c0_4] : memref<1x128xf32, #tpu.memory_space<vmem>>, vector<1x128xf32>
    %3 = vector.shape_cast %2 : vector<1x128xf32> to vector<1x128xf32>
    %4 = vector.broadcast %3 : vector<1x128xf32> to vector<2x128xf32>
    %c0_5 = arith.constant 0 : index
    %c0_6 = arith.constant 0 : index
    %c0_7 = arith.constant 0 : index
    %5 = vector.load %arg0[%c0_5, %c0_6, %c0_7] : memref<2x8x4xf32, #tpu.memory_space<vmem>>, vector<2x8x4xf32>
    %6 = vector.shape_cast %5 : vector<2x8x4xf32> to vector<16x4xf32>
    %c0_8 = arith.constant 0 : index
    %c0_9 = arith.constant 0 : index
    %7 = vector.load %arg1[%c0_8, %c0_9] : memref<4x128xf32, #tpu.memory_space<vmem>>, vector<4x128xf32>
    %cst = arith.constant dense<0.000000e+00> : vector<16x128xf32>
    %8 = tpu.matmul %6, %7, %cst {dimension_numbers = #tpu.dot_dimension_numbers<[1], [0], [0], [1], [0, 0, 1, 1], [], []>} : vector<16x4xf32>, vector<4x128xf32>, vector<16x128xf32> -> vector<16x128xf32>
    %c0_10 = arith.constant 0 : index
    %c0_11 = arith.constant 0 : index
    %9 = vector.load %arg3[%c0_10, %c0_11] : memref<1x128xf32, #tpu.memory_space<vmem>>, vector<1x128xf32>
    %10 = vector.broadcast %9 : vector<1x128xf32> to vector<16x128xf32>
    %11 = arith.addf %8, %10 : vector<16x128xf32>
    %12 = vector.shape_cast %11 : vector<16x128xf32> to vector<2x8x128xf32>
    %cst_12 = arith.constant 0.000000e+00 : f32
    %13 = vector.broadcast %cst_12 : f32 to vector<2x32xf32>
    %cst_13 = arith.constant 0.000000e+00 : f32
    %14 = vector.broadcast %cst_13 : f32 to vector<2x32xf32>
    %cst_14 = arith.constant 0.000000e+00 : f32
    %15 = vector.broadcast %cst_14 : f32 to vector<2x32xf32>
    %cst_15 = arith.constant 0.000000e+00 : f32
    %16 = vector.broadcast %cst_15 : f32 to vector<2x32xf32>
    %17 = vector.extract_strided_slice %12 {offsets = [0, 0, 0], sizes = [2, 1, 128], strides = [1, 1, 1]} : vector<2x8x128xf32> to vector<2x1x128xf32>
    %18 = vector.shape_cast %17 : vector<2x1x128xf32> to vector<2x128xf32>
    %cst_16 = arith.constant dense<0.000000e+00> : vector<2x128xf32>
    %19 = tpu.matmul %13, %0, %cst_16 {dimension_numbers = #tpu.dot_dimension_numbers<[1], [0], [0], [1], [0, 0, 1, 1], [], []>} : vector<2x32xf32>, vector<32x128xf32>, vector<2x128xf32> -> vector<2x128xf32>
    %20 = arith.addf %18, %19 : vector<2x128xf32>
    %21 = arith.negf %20 : vector<2x128xf32>
    %22 = math.exp %21 : vector<2x128xf32>
    %cst_17 = arith.constant 1.000000e+00 : f32
    %23 = vector.broadcast %cst_17 : f32 to vector<2x128xf32>
    %24 = arith.addf %23, %22 : vector<2x128xf32>
    %25 = arith.divf %23, %24 : vector<2x128xf32>
    %26 = vector.extract_strided_slice %20 {offsets = [0, 64], sizes = [2, 32], strides = [1, 1]} : vector<2x128xf32> to vector<2x32xf32>
    %27 = math.tanh %26 : vector<2x32xf32>
    %28 = vector.extract_strided_slice %25 {offsets = [0, 0], sizes = [2, 32], strides = [1, 1]} : vector<2x128xf32> to vector<2x32xf32>
    %29 = vector.extract_strided_slice %25 {offsets = [0, 32], sizes = [2, 32], strides = [1, 1]} : vector<2x128xf32> to vector<2x32xf32>
    %30 = vector.extract_strided_slice %25 {offsets = [0, 96], sizes = [2, 32], strides = [1, 1]} : vector<2x128xf32> to vector<2x32xf32>
    %31 = arith.mulf %29, %14 : vector<2x32xf32>
    %32 = arith.mulf %28, %27 : vector<2x32xf32>
    %33 = arith.addf %31, %32 : vector<2x32xf32>
    %34 = math.tanh %33 : vector<2x32xf32>
    %35 = arith.mulf %30, %34 : vector<2x32xf32>
    %cst_18 = arith.constant 0.000000e+00 : f32
    %36 = vector.broadcast %cst_18 : f32 to vector<2x32xf32>
    %37 = arith.maximumf %35, %36 : vector<2x32xf32>
    %38 = tpu.concatenate %37, %15 in 1 : vector<2x32xf32>, vector<2x32xf32> -> vector<2x64xf32>
    %cst_19 = arith.constant dense<0.000000e+00> : vector<2x128xf32>
    %39 = tpu.matmul %38, %1, %cst_19 {dimension_numbers = #tpu.dot_dimension_numbers<[1], [0], [0], [1], [0, 0, 1, 1], [], []>} : vector<2x64xf32>, vector<64x128xf32>, vector<2x128xf32> -> vector<2x128xf32>
    %40 = arith.addf %39, %4 : vector<2x128xf32>
    %41 = arith.negf %40 : vector<2x128xf32>
    %42 = math.exp %41 : vector<2x128xf32>
    %cst_20 = arith.constant 1.000000e+00 : f32
    %43 = vector.broadcast %cst_20 : f32 to vector<2x128xf32>
    %44 = arith.addf %43, %42 : vector<2x128xf32>
    %45 = arith.divf %43, %44 : vector<2x128xf32>
    %46 = vector.extract_strided_slice %40 {offsets = [0, 64], sizes = [2, 32], strides = [1, 1]} : vector<2x128xf32> to vector<2x32xf32>
    %47 = math.tanh %46 : vector<2x32xf32>
    %48 = vector.extract_strided_slice %45 {offsets = [0, 0], sizes = [2, 32], strides = [1, 1]} : vector<2x128xf32> to vector<2x32xf32>
    %49 = vector.extract_strided_slice %45 {offsets = [0, 32], sizes = [2, 32], strides = [1, 1]} : vector<2x128xf32> to vector<2x32xf32>
    %50 = vector.extract_strided_slice %45 {offsets = [0, 96], sizes = [2, 32], strides = [1, 1]} : vector<2x128xf32> to vector<2x32xf32>
    %51 = arith.mulf %49, %16 : vector<2x32xf32>
    %52 = arith.mulf %48, %47 : vector<2x32xf32>
    %53 = arith.addf %51, %52 : vector<2x32xf32>
    %54 = math.tanh %53 : vector<2x32xf32>
    %55 = arith.mulf %50, %54 : vector<2x32xf32>
    %cst_21 = arith.constant 0.000000e+00 : f32
    %56 = vector.broadcast %cst_21 : f32 to vector<2x32xf32>
    %57 = arith.maximumf %55, %56 : vector<2x32xf32>
    %58 = vector.extract_strided_slice %12 {offsets = [0, 1, 0], sizes = [2, 1, 128], strides = [1, 1, 1]} : vector<2x8x128xf32> to vector<2x1x128xf32>
    %59 = vector.shape_cast %58 : vector<2x1x128xf32> to vector<2x128xf32>
    %cst_22 = arith.constant dense<0.000000e+00> : vector<2x128xf32>
    %60 = tpu.matmul %35, %0, %cst_22 {dimension_numbers = #tpu.dot_dimension_numbers<[1], [0], [0], [1], [0, 0, 1, 1], [], []>} : vector<2x32xf32>, vector<32x128xf32>, vector<2x128xf32> -> vector<2x128xf32>
    %61 = arith.addf %59, %60 : vector<2x128xf32>
    %62 = arith.negf %61 : vector<2x128xf32>
    %63 = math.exp %62 : vector<2x128xf32>
    %cst_23 = arith.constant 1.000000e+00 : f32
    %64 = vector.broadcast %cst_23 : f32 to vector<2x128xf32>
    %65 = arith.addf %64, %63 : vector<2x128xf32>
    %66 = arith.divf %64, %65 : vector<2x128xf32>
    %67 = vector.extract_strided_slice %61 {offsets = [0, 64], sizes = [2, 32], strides = [1, 1]} : vector<2x128xf32> to vector<2x32xf32>
    %68 = math.tanh %67 : vector<2x32xf32>
    %69 = vector.extract_strided_slice %66 {offsets = [0, 0], sizes = [2, 32], strides = [1, 1]} : vector<2x128xf32> to vector<2x32xf32>
    %70 = vector.extract_strided_slice %66 {offsets = [0, 32], sizes = [2, 32], strides = [1, 1]} : vector<2x128xf32> to vector<2x32xf32>
    %71 = vector.extract_strided_slice %66 {offsets = [0, 96], sizes = [2, 32], strides = [1, 1]} : vector<2x128xf32> to vector<2x32xf32>
    %72 = arith.mulf %70, %33 : vector<2x32xf32>
    %73 = arith.mulf %69, %68 : vector<2x32xf32>
    %74 = arith.addf %72, %73 : vector<2x32xf32>
    %75 = math.tanh %74 : vector<2x32xf32>
    %76 = arith.mulf %71, %75 : vector<2x32xf32>
    %cst_24 = arith.constant 0.000000e+00 : f32
    %77 = vector.broadcast %cst_24 : f32 to vector<2x32xf32>
    %78 = arith.maximumf %76, %77 : vector<2x32xf32>
    %79 = tpu.concatenate %78, %55 in 1 : vector<2x32xf32>, vector<2x32xf32> -> vector<2x64xf32>
    %cst_25 = arith.constant dense<0.000000e+00> : vector<2x128xf32>
    %80 = tpu.matmul %79, %1, %cst_25 {dimension_numbers = #tpu.dot_dimension_numbers<[1], [0], [0], [1], [0, 0, 1, 1], [], []>} : vector<2x64xf32>, vector<64x128xf32>, vector<2x128xf32> -> vector<2x128xf32>
    %81 = arith.addf %80, %4 : vector<2x128xf32>
    %82 = arith.negf %81 : vector<2x128xf32>
    %83 = math.exp %82 : vector<2x128xf32>
    %cst_26 = arith.constant 1.000000e+00 : f32
    %84 = vector.broadcast %cst_26 : f32 to vector<2x128xf32>
    %85 = arith.addf %84, %83 : vector<2x128xf32>
    %86 = arith.divf %84, %85 : vector<2x128xf32>
    %87 = vector.extract_strided_slice %81 {offsets = [0, 64], sizes = [2, 32], strides = [1, 1]} : vector<2x128xf32> to vector<2x32xf32>
    %88 = math.tanh %87 : vector<2x32xf32>
    %89 = vector.extract_strided_slice %86 {offsets = [0, 0], sizes = [2, 32], strides = [1, 1]} : vector<2x128xf32> to vector<2x32xf32>
    %90 = vector.extract_strided_slice %86 {offsets = [0, 32], sizes = [2, 32], strides = [1, 1]} : vector<2x128xf32> to vector<2x32xf32>
    %91 = vector.extract_strided_slice %86 {offsets = [0, 96], sizes = [2, 32], strides = [1, 1]} : vector<2x128xf32> to vector<2x32xf32>
    %92 = arith.mulf %90, %53 : vector<2x32xf32>
    %93 = arith.mulf %89, %88 : vector<2x32xf32>
    %94 = arith.addf %92, %93 : vector<2x32xf32>
    %95 = math.tanh %94 : vector<2x32xf32>
    %96 = arith.mulf %91, %95 : vector<2x32xf32>
    %cst_27 = arith.constant 0.000000e+00 : f32
    %97 = vector.broadcast %cst_27 : f32 to vector<2x32xf32>
    %98 = arith.maximumf %96, %97 : vector<2x32xf32>
    %99 = vector.extract_strided_slice %12 {offsets = [0, 2, 0], sizes = [2, 1, 128], strides = [1, 1, 1]} : vector<2x8x128xf32> to vector<2x1x128xf32>
    %100 = vector.shape_cast %99 : vector<2x1x128xf32> to vector<2x128xf32>
    %cst_28 = arith.constant dense<0.000000e+00> : vector<2x128xf32>
    %101 = tpu.matmul %76, %0, %cst_28 {dimension_numbers = #tpu.dot_dimension_numbers<[1], [0], [0], [1], [0, 0, 1, 1], [], []>} : vector<2x32xf32>, vector<32x128xf32>, vector<2x128xf32> -> vector<2x128xf32>
    %102 = arith.addf %100, %101 : vector<2x128xf32>
    %103 = arith.negf %102 : vector<2x128xf32>
    %104 = math.exp %103 : vector<2x128xf32>
    %cst_29 = arith.constant 1.000000e+00 : f32
    %105 = vector.broadcast %cst_29 : f32 to vector<2x128xf32>
    %106 = arith.addf %105, %104 : vector<2x128xf32>
    %107 = arith.divf %105, %106 : vector<2x128xf32>
    %108 = vector.extract_strided_slice %102 {offsets = [0, 64], sizes = [2, 32], strides = [1, 1]} : vector<2x128xf32> to vector<2x32xf32>
    %109 = math.tanh %108 : vector<2x32xf32>
    %110 = vector.extract_strided_slice %107 {offsets = [0, 0], sizes = [2, 32], strides = [1, 1]} : vector<2x128xf32> to vector<2x32xf32>
    %111 = vector.extract_strided_slice %107 {offsets = [0, 32], sizes = [2, 32], strides = [1, 1]} : vector<2x128xf32> to vector<2x32xf32>
    %112 = vector.extract_strided_slice %107 {offsets = [0, 96], sizes = [2, 32], strides = [1, 1]} : vector<2x128xf32> to vector<2x32xf32>
    %113 = arith.mulf %111, %74 : vector<2x32xf32>
    %114 = arith.mulf %110, %109 : vector<2x32xf32>
    %115 = arith.addf %113, %114 : vector<2x32xf32>
    %116 = math.tanh %115 : vector<2x32xf32>
    %117 = arith.mulf %112, %116 : vector<2x32xf32>
    %cst_30 = arith.constant 0.000000e+00 : f32
    %118 = vector.broadcast %cst_30 : f32 to vector<2x32xf32>
    %119 = arith.maximumf %117, %118 : vector<2x32xf32>
    %120 = tpu.concatenate %119, %96 in 1 : vector<2x32xf32>, vector<2x32xf32> -> vector<2x64xf32>
    %cst_31 = arith.constant dense<0.000000e+00> : vector<2x128xf32>
    %121 = tpu.matmul %120, %1, %cst_31 {dimension_numbers = #tpu.dot_dimension_numbers<[1], [0], [0], [1], [0, 0, 1, 1], [], []>} : vector<2x64xf32>, vector<64x128xf32>, vector<2x128xf32> -> vector<2x128xf32>
    %122 = arith.addf %121, %4 : vector<2x128xf32>
    %123 = arith.negf %122 : vector<2x128xf32>
    %124 = math.exp %123 : vector<2x128xf32>
    %cst_32 = arith.constant 1.000000e+00 : f32
    %125 = vector.broadcast %cst_32 : f32 to vector<2x128xf32>
    %126 = arith.addf %125, %124 : vector<2x128xf32>
    %127 = arith.divf %125, %126 : vector<2x128xf32>
    %128 = vector.extract_strided_slice %122 {offsets = [0, 64], sizes = [2, 32], strides = [1, 1]} : vector<2x128xf32> to vector<2x32xf32>
    %129 = math.tanh %128 : vector<2x32xf32>
    %130 = vector.extract_strided_slice %127 {offsets = [0, 0], sizes = [2, 32], strides = [1, 1]} : vector<2x128xf32> to vector<2x32xf32>
    %131 = vector.extract_strided_slice %127 {offsets = [0, 32], sizes = [2, 32], strides = [1, 1]} : vector<2x128xf32> to vector<2x32xf32>
    %132 = vector.extract_strided_slice %127 {offsets = [0, 96], sizes = [2, 32], strides = [1, 1]} : vector<2x128xf32> to vector<2x32xf32>
    %133 = arith.mulf %131, %94 : vector<2x32xf32>
    %134 = arith.mulf %130, %129 : vector<2x32xf32>
    %135 = arith.addf %133, %134 : vector<2x32xf32>
    %136 = math.tanh %135 : vector<2x32xf32>
    %137 = arith.mulf %132, %136 : vector<2x32xf32>
    %cst_33 = arith.constant 0.000000e+00 : f32
    %138 = vector.broadcast %cst_33 : f32 to vector<2x32xf32>
    %139 = arith.maximumf %137, %138 : vector<2x32xf32>
    %140 = vector.extract_strided_slice %12 {offsets = [0, 3, 0], sizes = [2, 1, 128], strides = [1, 1, 1]} : vector<2x8x128xf32> to vector<2x1x128xf32>
    %141 = vector.shape_cast %140 : vector<2x1x128xf32> to vector<2x128xf32>
    %cst_34 = arith.constant dense<0.000000e+00> : vector<2x128xf32>
    %142 = tpu.matmul %117, %0, %cst_34 {dimension_numbers = #tpu.dot_dimension_numbers<[1], [0], [0], [1], [0, 0, 1, 1], [], []>} : vector<2x32xf32>, vector<32x128xf32>, vector<2x128xf32> -> vector<2x128xf32>
    %143 = arith.addf %141, %142 : vector<2x128xf32>
    %144 = arith.negf %143 : vector<2x128xf32>
    %145 = math.exp %144 : vector<2x128xf32>
    %cst_35 = arith.constant 1.000000e+00 : f32
    %146 = vector.broadcast %cst_35 : f32 to vector<2x128xf32>
    %147 = arith.addf %146, %145 : vector<2x128xf32>
    %148 = arith.divf %146, %147 : vector<2x128xf32>
    %149 = vector.extract_strided_slice %143 {offsets = [0, 64], sizes = [2, 32], strides = [1, 1]} : vector<2x128xf32> to vector<2x32xf32>
    %150 = math.tanh %149 : vector<2x32xf32>
    %151 = vector.extract_strided_slice %148 {offsets = [0, 0], sizes = [2, 32], strides = [1, 1]} : vector<2x128xf32> to vector<2x32xf32>
    %152 = vector.extract_strided_slice %148 {offsets = [0, 32], sizes = [2, 32], strides = [1, 1]} : vector<2x128xf32> to vector<2x32xf32>
    %153 = vector.extract_strided_slice %148 {offsets = [0, 96], sizes = [2, 32], strides = [1, 1]} : vector<2x128xf32> to vector<2x32xf32>
    %154 = arith.mulf %152, %115 : vector<2x32xf32>
    %155 = arith.mulf %151, %150 : vector<2x32xf32>
    %156 = arith.addf %154, %155 : vector<2x32xf32>
    %157 = math.tanh %156 : vector<2x32xf32>
    %158 = arith.mulf %153, %157 : vector<2x32xf32>
    %cst_36 = arith.constant 0.000000e+00 : f32
    %159 = vector.broadcast %cst_36 : f32 to vector<2x32xf32>
    %160 = arith.maximumf %158, %159 : vector<2x32xf32>
    %161 = tpu.concatenate %160, %137 in 1 : vector<2x32xf32>, vector<2x32xf32> -> vector<2x64xf32>
    %cst_37 = arith.constant dense<0.000000e+00> : vector<2x128xf32>
    %162 = tpu.matmul %161, %1, %cst_37 {dimension_numbers = #tpu.dot_dimension_numbers<[1], [0], [0], [1], [0, 0, 1, 1], [], []>} : vector<2x64xf32>, vector<64x128xf32>, vector<2x128xf32> -> vector<2x128xf32>
    %163 = arith.addf %162, %4 : vector<2x128xf32>
    %164 = arith.negf %163 : vector<2x128xf32>
    %165 = math.exp %164 : vector<2x128xf32>
    %cst_38 = arith.constant 1.000000e+00 : f32
    %166 = vector.broadcast %cst_38 : f32 to vector<2x128xf32>
    %167 = arith.addf %166, %165 : vector<2x128xf32>
    %168 = arith.divf %166, %167 : vector<2x128xf32>
    %169 = vector.extract_strided_slice %163 {offsets = [0, 64], sizes = [2, 32], strides = [1, 1]} : vector<2x128xf32> to vector<2x32xf32>
    %170 = math.tanh %169 : vector<2x32xf32>
    %171 = vector.extract_strided_slice %168 {offsets = [0, 0], sizes = [2, 32], strides = [1, 1]} : vector<2x128xf32> to vector<2x32xf32>
    %172 = vector.extract_strided_slice %168 {offsets = [0, 32], sizes = [2, 32], strides = [1, 1]} : vector<2x128xf32> to vector<2x32xf32>
    %173 = vector.extract_strided_slice %168 {offsets = [0, 96], sizes = [2, 32], strides = [1, 1]} : vector<2x128xf32> to vector<2x32xf32>
    %174 = arith.mulf %172, %135 : vector<2x32xf32>
    %175 = arith.mulf %171, %170 : vector<2x32xf32>
    %176 = arith.addf %174, %175 : vector<2x32xf32>
    %177 = math.tanh %176 : vector<2x32xf32>
    %178 = arith.mulf %173, %177 : vector<2x32xf32>
    %cst_39 = arith.constant 0.000000e+00 : f32
    %179 = vector.broadcast %cst_39 : f32 to vector<2x32xf32>
    %180 = arith.maximumf %178, %179 : vector<2x32xf32>
    %181 = vector.extract_strided_slice %12 {offsets = [0, 4, 0], sizes = [2, 1, 128], strides = [1, 1, 1]} : vector<2x8x128xf32> to vector<2x1x128xf32>
    %182 = vector.shape_cast %181 : vector<2x1x128xf32> to vector<2x128xf32>
    %cst_40 = arith.constant dense<0.000000e+00> : vector<2x128xf32>
    %183 = tpu.matmul %158, %0, %cst_40 {dimension_numbers = #tpu.dot_dimension_numbers<[1], [0], [0], [1], [0, 0, 1, 1], [], []>} : vector<2x32xf32>, vector<32x128xf32>, vector<2x128xf32> -> vector<2x128xf32>
    %184 = arith.addf %182, %183 : vector<2x128xf32>
    %185 = arith.negf %184 : vector<2x128xf32>
    %186 = math.exp %185 : vector<2x128xf32>
    %cst_41 = arith.constant 1.000000e+00 : f32
    %187 = vector.broadcast %cst_41 : f32 to vector<2x128xf32>
    %188 = arith.addf %187, %186 : vector<2x128xf32>
    %189 = arith.divf %187, %188 : vector<2x128xf32>
    %190 = vector.extract_strided_slice %184 {offsets = [0, 64], sizes = [2, 32], strides = [1, 1]} : vector<2x128xf32> to vector<2x32xf32>
    %191 = math.tanh %190 : vector<2x32xf32>
    %192 = vector.extract_strided_slice %189 {offsets = [0, 0], sizes = [2, 32], strides = [1, 1]} : vector<2x128xf32> to vector<2x32xf32>
    %193 = vector.extract_strided_slice %189 {offsets = [0, 32], sizes = [2, 32], strides = [1, 1]} : vector<2x128xf32> to vector<2x32xf32>
    %194 = vector.extract_strided_slice %189 {offsets = [0, 96], sizes = [2, 32], strides = [1, 1]} : vector<2x128xf32> to vector<2x32xf32>
    %195 = arith.mulf %193, %156 : vector<2x32xf32>
    %196 = arith.mulf %192, %191 : vector<2x32xf32>
    %197 = arith.addf %195, %196 : vector<2x32xf32>
    %198 = math.tanh %197 : vector<2x32xf32>
    %199 = arith.mulf %194, %198 : vector<2x32xf32>
    %cst_42 = arith.constant 0.000000e+00 : f32
    %200 = vector.broadcast %cst_42 : f32 to vector<2x32xf32>
    %201 = arith.maximumf %199, %200 : vector<2x32xf32>
    %202 = tpu.concatenate %201, %178 in 1 : vector<2x32xf32>, vector<2x32xf32> -> vector<2x64xf32>
    %cst_43 = arith.constant dense<0.000000e+00> : vector<2x128xf32>
    %203 = tpu.matmul %202, %1, %cst_43 {dimension_numbers = #tpu.dot_dimension_numbers<[1], [0], [0], [1], [0, 0, 1, 1], [], []>} : vector<2x64xf32>, vector<64x128xf32>, vector<2x128xf32> -> vector<2x128xf32>
    %204 = arith.addf %203, %4 : vector<2x128xf32>
    %205 = arith.negf %204 : vector<2x128xf32>
    %206 = math.exp %205 : vector<2x128xf32>
    %cst_44 = arith.constant 1.000000e+00 : f32
    %207 = vector.broadcast %cst_44 : f32 to vector<2x128xf32>
    %208 = arith.addf %207, %206 : vector<2x128xf32>
    %209 = arith.divf %207, %208 : vector<2x128xf32>
    %210 = vector.extract_strided_slice %204 {offsets = [0, 64], sizes = [2, 32], strides = [1, 1]} : vector<2x128xf32> to vector<2x32xf32>
    %211 = math.tanh %210 : vector<2x32xf32>
    %212 = vector.extract_strided_slice %209 {offsets = [0, 0], sizes = [2, 32], strides = [1, 1]} : vector<2x128xf32> to vector<2x32xf32>
    %213 = vector.extract_strided_slice %209 {offsets = [0, 32], sizes = [2, 32], strides = [1, 1]} : vector<2x128xf32> to vector<2x32xf32>
    %214 = vector.extract_strided_slice %209 {offsets = [0, 96], sizes = [2, 32], strides = [1, 1]} : vector<2x128xf32> to vector<2x32xf32>
    %215 = arith.mulf %213, %176 : vector<2x32xf32>
    %216 = arith.mulf %212, %211 : vector<2x32xf32>
    %217 = arith.addf %215, %216 : vector<2x32xf32>
    %218 = math.tanh %217 : vector<2x32xf32>
    %219 = arith.mulf %214, %218 : vector<2x32xf32>
    %cst_45 = arith.constant 0.000000e+00 : f32
    %220 = vector.broadcast %cst_45 : f32 to vector<2x32xf32>
    %221 = arith.maximumf %219, %220 : vector<2x32xf32>
    %222 = vector.extract_strided_slice %12 {offsets = [0, 5, 0], sizes = [2, 1, 128], strides = [1, 1, 1]} : vector<2x8x128xf32> to vector<2x1x128xf32>
    %223 = vector.shape_cast %222 : vector<2x1x128xf32> to vector<2x128xf32>
    %cst_46 = arith.constant dense<0.000000e+00> : vector<2x128xf32>
    %224 = tpu.matmul %199, %0, %cst_46 {dimension_numbers = #tpu.dot_dimension_numbers<[1], [0], [0], [1], [0, 0, 1, 1], [], []>} : vector<2x32xf32>, vector<32x128xf32>, vector<2x128xf32> -> vector<2x128xf32>
    %225 = arith.addf %223, %224 : vector<2x128xf32>
    %226 = arith.negf %225 : vector<2x128xf32>
    %227 = math.exp %226 : vector<2x128xf32>
    %cst_47 = arith.constant 1.000000e+00 : f32
    %228 = vector.broadcast %cst_47 : f32 to vector<2x128xf32>
    %229 = arith.addf %228, %227 : vector<2x128xf32>
    %230 = arith.divf %228, %229 : vector<2x128xf32>
    %231 = vector.extract_strided_slice %225 {offsets = [0, 64], sizes = [2, 32], strides = [1, 1]} : vector<2x128xf32> to vector<2x32xf32>
    %232 = math.tanh %231 : vector<2x32xf32>
    %233 = vector.extract_strided_slice %230 {offsets = [0, 0], sizes = [2, 32], strides = [1, 1]} : vector<2x128xf32> to vector<2x32xf32>
    %234 = vector.extract_strided_slice %230 {offsets = [0, 32], sizes = [2, 32], strides = [1, 1]} : vector<2x128xf32> to vector<2x32xf32>
    %235 = vector.extract_strided_slice %230 {offsets = [0, 96], sizes = [2, 32], strides = [1, 1]} : vector<2x128xf32> to vector<2x32xf32>
    %236 = arith.mulf %234, %197 : vector<2x32xf32>
    %237 = arith.mulf %233, %232 : vector<2x32xf32>
    %238 = arith.addf %236, %237 : vector<2x32xf32>
    %239 = math.tanh %238 : vector<2x32xf32>
    %240 = arith.mulf %235, %239 : vector<2x32xf32>
    %cst_48 = arith.constant 0.000000e+00 : f32
    %241 = vector.broadcast %cst_48 : f32 to vector<2x32xf32>
    %242 = arith.maximumf %240, %241 : vector<2x32xf32>
    %243 = tpu.concatenate %242, %219 in 1 : vector<2x32xf32>, vector<2x32xf32> -> vector<2x64xf32>
    %cst_49 = arith.constant dense<0.000000e+00> : vector<2x128xf32>
    %244 = tpu.matmul %243, %1, %cst_49 {dimension_numbers = #tpu.dot_dimension_numbers<[1], [0], [0], [1], [0, 0, 1, 1], [], []>} : vector<2x64xf32>, vector<64x128xf32>, vector<2x128xf32> -> vector<2x128xf32>
    %245 = arith.addf %244, %4 : vector<2x128xf32>
    %246 = arith.negf %245 : vector<2x128xf32>
    %247 = math.exp %246 : vector<2x128xf32>
    %cst_50 = arith.constant 1.000000e+00 : f32
    %248 = vector.broadcast %cst_50 : f32 to vector<2x128xf32>
    %249 = arith.addf %248, %247 : vector<2x128xf32>
    %250 = arith.divf %248, %249 : vector<2x128xf32>
    %251 = vector.extract_strided_slice %245 {offsets = [0, 64], sizes = [2, 32], strides = [1, 1]} : vector<2x128xf32> to vector<2x32xf32>
    %252 = math.tanh %251 : vector<2x32xf32>
    %253 = vector.extract_strided_slice %250 {offsets = [0, 0], sizes = [2, 32], strides = [1, 1]} : vector<2x128xf32> to vector<2x32xf32>
    %254 = vector.extract_strided_slice %250 {offsets = [0, 32], sizes = [2, 32], strides = [1, 1]} : vector<2x128xf32> to vector<2x32xf32>
    %255 = vector.extract_strided_slice %250 {offsets = [0, 96], sizes = [2, 32], strides = [1, 1]} : vector<2x128xf32> to vector<2x32xf32>
    %256 = arith.mulf %254, %217 : vector<2x32xf32>
    %257 = arith.mulf %253, %252 : vector<2x32xf32>
    %258 = arith.addf %256, %257 : vector<2x32xf32>
    %259 = math.tanh %258 : vector<2x32xf32>
    %260 = arith.mulf %255, %259 : vector<2x32xf32>
    %cst_51 = arith.constant 0.000000e+00 : f32
    %261 = vector.broadcast %cst_51 : f32 to vector<2x32xf32>
    %262 = arith.maximumf %260, %261 : vector<2x32xf32>
    %263 = vector.extract_strided_slice %12 {offsets = [0, 6, 0], sizes = [2, 1, 128], strides = [1, 1, 1]} : vector<2x8x128xf32> to vector<2x1x128xf32>
    %264 = vector.shape_cast %263 : vector<2x1x128xf32> to vector<2x128xf32>
    %cst_52 = arith.constant dense<0.000000e+00> : vector<2x128xf32>
    %265 = tpu.matmul %240, %0, %cst_52 {dimension_numbers = #tpu.dot_dimension_numbers<[1], [0], [0], [1], [0, 0, 1, 1], [], []>} : vector<2x32xf32>, vector<32x128xf32>, vector<2x128xf32> -> vector<2x128xf32>
    %266 = arith.addf %264, %265 : vector<2x128xf32>
    %267 = arith.negf %266 : vector<2x128xf32>
    %268 = math.exp %267 : vector<2x128xf32>
    %cst_53 = arith.constant 1.000000e+00 : f32
    %269 = vector.broadcast %cst_53 : f32 to vector<2x128xf32>
    %270 = arith.addf %269, %268 : vector<2x128xf32>
    %271 = arith.divf %269, %270 : vector<2x128xf32>
    %272 = vector.extract_strided_slice %266 {offsets = [0, 64], sizes = [2, 32], strides = [1, 1]} : vector<2x128xf32> to vector<2x32xf32>
    %273 = math.tanh %272 : vector<2x32xf32>
    %274 = vector.extract_strided_slice %271 {offsets = [0, 0], sizes = [2, 32], strides = [1, 1]} : vector<2x128xf32> to vector<2x32xf32>
    %275 = vector.extract_strided_slice %271 {offsets = [0, 32], sizes = [2, 32], strides = [1, 1]} : vector<2x128xf32> to vector<2x32xf32>
    %276 = vector.extract_strided_slice %271 {offsets = [0, 96], sizes = [2, 32], strides = [1, 1]} : vector<2x128xf32> to vector<2x32xf32>
    %277 = arith.mulf %275, %238 : vector<2x32xf32>
    %278 = arith.mulf %274, %273 : vector<2x32xf32>
    %279 = arith.addf %277, %278 : vector<2x32xf32>
    %280 = math.tanh %279 : vector<2x32xf32>
    %281 = arith.mulf %276, %280 : vector<2x32xf32>
    %cst_54 = arith.constant 0.000000e+00 : f32
    %282 = vector.broadcast %cst_54 : f32 to vector<2x32xf32>
    %283 = arith.maximumf %281, %282 : vector<2x32xf32>
    %284 = tpu.concatenate %283, %260 in 1 : vector<2x32xf32>, vector<2x32xf32> -> vector<2x64xf32>
    %cst_55 = arith.constant dense<0.000000e+00> : vector<2x128xf32>
    %285 = tpu.matmul %284, %1, %cst_55 {dimension_numbers = #tpu.dot_dimension_numbers<[1], [0], [0], [1], [0, 0, 1, 1], [], []>} : vector<2x64xf32>, vector<64x128xf32>, vector<2x128xf32> -> vector<2x128xf32>
    %286 = arith.addf %285, %4 : vector<2x128xf32>
    %287 = arith.negf %286 : vector<2x128xf32>
    %288 = math.exp %287 : vector<2x128xf32>
    %cst_56 = arith.constant 1.000000e+00 : f32
    %289 = vector.broadcast %cst_56 : f32 to vector<2x128xf32>
    %290 = arith.addf %289, %288 : vector<2x128xf32>
    %291 = arith.divf %289, %290 : vector<2x128xf32>
    %292 = vector.extract_strided_slice %286 {offsets = [0, 64], sizes = [2, 32], strides = [1, 1]} : vector<2x128xf32> to vector<2x32xf32>
    %293 = math.tanh %292 : vector<2x32xf32>
    %294 = vector.extract_strided_slice %291 {offsets = [0, 0], sizes = [2, 32], strides = [1, 1]} : vector<2x128xf32> to vector<2x32xf32>
    %295 = vector.extract_strided_slice %291 {offsets = [0, 32], sizes = [2, 32], strides = [1, 1]} : vector<2x128xf32> to vector<2x32xf32>
    %296 = vector.extract_strided_slice %291 {offsets = [0, 96], sizes = [2, 32], strides = [1, 1]} : vector<2x128xf32> to vector<2x32xf32>
    %297 = arith.mulf %295, %258 : vector<2x32xf32>
    %298 = arith.mulf %294, %293 : vector<2x32xf32>
    %299 = arith.addf %297, %298 : vector<2x32xf32>
    %300 = math.tanh %299 : vector<2x32xf32>
    %301 = arith.mulf %296, %300 : vector<2x32xf32>
    %cst_57 = arith.constant 0.000000e+00 : f32
    %302 = vector.broadcast %cst_57 : f32 to vector<2x32xf32>
    %303 = arith.maximumf %301, %302 : vector<2x32xf32>
    %304 = vector.extract_strided_slice %12 {offsets = [0, 7, 0], sizes = [2, 1, 128], strides = [1, 1, 1]} : vector<2x8x128xf32> to vector<2x1x128xf32>
    %305 = vector.shape_cast %304 : vector<2x1x128xf32> to vector<2x128xf32>
    %cst_58 = arith.constant dense<0.000000e+00> : vector<2x128xf32>
    %306 = tpu.matmul %281, %0, %cst_58 {dimension_numbers = #tpu.dot_dimension_numbers<[1], [0], [0], [1], [0, 0, 1, 1], [], []>} : vector<2x32xf32>, vector<32x128xf32>, vector<2x128xf32> -> vector<2x128xf32>
    %307 = arith.addf %305, %306 : vector<2x128xf32>
    %308 = arith.negf %307 : vector<2x128xf32>
    %309 = math.exp %308 : vector<2x128xf32>
    %cst_59 = arith.constant 1.000000e+00 : f32
    %310 = vector.broadcast %cst_59 : f32 to vector<2x128xf32>
    %311 = arith.addf %310, %309 : vector<2x128xf32>
    %312 = arith.divf %310, %311 : vector<2x128xf32>
    %313 = vector.extract_strided_slice %307 {offsets = [0, 64], sizes = [2, 32], strides = [1, 1]} : vector<2x128xf32> to vector<2x32xf32>
    %314 = math.tanh %313 : vector<2x32xf32>
    %315 = vector.extract_strided_slice %312 {offsets = [0, 0], sizes = [2, 32], strides = [1, 1]} : vector<2x128xf32> to vector<2x32xf32>
    %316 = vector.extract_strided_slice %312 {offsets = [0, 32], sizes = [2, 32], strides = [1, 1]} : vector<2x128xf32> to vector<2x32xf32>
    %317 = vector.extract_strided_slice %312 {offsets = [0, 96], sizes = [2, 32], strides = [1, 1]} : vector<2x128xf32> to vector<2x32xf32>
    %318 = arith.mulf %316, %279 : vector<2x32xf32>
    %319 = arith.mulf %315, %314 : vector<2x32xf32>
    %320 = arith.addf %318, %319 : vector<2x32xf32>
    %321 = math.tanh %320 : vector<2x32xf32>
    %322 = arith.mulf %317, %321 : vector<2x32xf32>
    %cst_60 = arith.constant 0.000000e+00 : f32
    %323 = vector.broadcast %cst_60 : f32 to vector<2x32xf32>
    %324 = arith.maximumf %322, %323 : vector<2x32xf32>
    %325 = tpu.concatenate %324, %301 in 1 : vector<2x32xf32>, vector<2x32xf32> -> vector<2x64xf32>
    %cst_61 = arith.constant dense<0.000000e+00> : vector<2x128xf32>
    %326 = tpu.matmul %325, %1, %cst_61 {dimension_numbers = #tpu.dot_dimension_numbers<[1], [0], [0], [1], [0, 0, 1, 1], [], []>} : vector<2x64xf32>, vector<64x128xf32>, vector<2x128xf32> -> vector<2x128xf32>
    %327 = arith.addf %326, %4 : vector<2x128xf32>
    %328 = arith.negf %327 : vector<2x128xf32>
    %329 = math.exp %328 : vector<2x128xf32>
    %cst_62 = arith.constant 1.000000e+00 : f32
    %330 = vector.broadcast %cst_62 : f32 to vector<2x128xf32>
    %331 = arith.addf %330, %329 : vector<2x128xf32>
    %332 = arith.divf %330, %331 : vector<2x128xf32>
    %333 = vector.extract_strided_slice %327 {offsets = [0, 64], sizes = [2, 32], strides = [1, 1]} : vector<2x128xf32> to vector<2x32xf32>
    %334 = math.tanh %333 : vector<2x32xf32>
    %335 = vector.extract_strided_slice %332 {offsets = [0, 0], sizes = [2, 32], strides = [1, 1]} : vector<2x128xf32> to vector<2x32xf32>
    %336 = vector.extract_strided_slice %332 {offsets = [0, 32], sizes = [2, 32], strides = [1, 1]} : vector<2x128xf32> to vector<2x32xf32>
    %337 = vector.extract_strided_slice %332 {offsets = [0, 96], sizes = [2, 32], strides = [1, 1]} : vector<2x128xf32> to vector<2x32xf32>
    %338 = arith.mulf %336, %299 : vector<2x32xf32>
    %339 = arith.mulf %335, %334 : vector<2x32xf32>
    %340 = arith.addf %338, %339 : vector<2x32xf32>
    %341 = math.tanh %340 : vector<2x32xf32>
    %342 = arith.mulf %337, %341 : vector<2x32xf32>
    %cst_63 = arith.constant 0.000000e+00 : f32
    %343 = vector.broadcast %cst_63 : f32 to vector<2x32xf32>
    %344 = arith.maximumf %342, %343 : vector<2x32xf32>
    %345 = tpu.concatenate %57, %98, %139, %180, %221, %262, %303, %344 in 1 : vector<2x32xf32>, vector<2x32xf32>, vector<2x32xf32>, vector<2x32xf32>, vector<2x32xf32>, vector<2x32xf32>, vector<2x32xf32>, vector<2x32xf32> -> vector<2x256xf32>
    %c0_64 = arith.constant 0 : index
    %c0_65 = arith.constant 0 : index
    %346 = vector.load %arg6[%c0_64, %c0_65] : memref<256x128xf32, #tpu.memory_space<vmem>>, vector<256x128xf32>
    %cst_66 = arith.constant dense<0.000000e+00> : vector<2x128xf32>
    %347 = tpu.matmul %345, %346, %cst_66 {dimension_numbers = #tpu.dot_dimension_numbers<[1], [0], [0], [1], [0, 0, 1, 1], [], []>} : vector<2x256xf32>, vector<256x128xf32>, vector<2x128xf32> -> vector<2x128xf32>
    %c0_67 = arith.constant 0 : index
    %c0_68 = arith.constant 0 : index
    %348 = vector.load %arg7[%c0_67, %c0_68] : memref<1x128xf32, #tpu.memory_space<vmem>>, vector<1x128xf32>
    %349 = vector.broadcast %348 : vector<1x128xf32> to vector<2x128xf32>
    %350 = arith.addf %347, %349 : vector<2x128xf32>
    %cst_69 = arith.constant 0.000000e+00 : f32
    %351 = vector.broadcast %cst_69 : f32 to vector<2x128xf32>
    %352 = arith.maximumf %350, %351 : vector<2x128xf32>
    %c0_70 = arith.constant 0 : index
    %c0_71 = arith.constant 0 : index
    %353 = vector.load %arg8[%c0_70, %c0_71] : memref<128x4xf32, #tpu.memory_space<vmem>>, vector<128x4xf32>
    %cst_72 = arith.constant dense<0.000000e+00> : vector<2x4xf32>
    %354 = tpu.matmul %352, %353, %cst_72 {dimension_numbers = #tpu.dot_dimension_numbers<[1], [0], [0], [1], [0, 0, 1, 1], [], []>} : vector<2x128xf32>, vector<128x4xf32>, vector<2x4xf32> -> vector<2x4xf32>
    %c0_73 = arith.constant 0 : index
    %c0_74 = arith.constant 0 : index
    %355 = vector.load %arg9[%c0_73, %c0_74] : memref<1x4xf32, #tpu.memory_space<vmem>>, vector<1x4xf32>
    %356 = vector.broadcast %355 : vector<1x4xf32> to vector<2x4xf32>
    %357 = arith.addf %354, %356 : vector<2x4xf32>
    %358 = math.tanh %357 : vector<2x4xf32>
    %c0_75 = arith.constant 0 : index
    %c0_76 = arith.constant 0 : index
    %359 = vector.load %arg10[%c0_75, %c0_76] : memref<2x4xf32, #tpu.memory_space<vmem>>, vector<2x4xf32>
    tpu.vector_store %arg10[%c0_75, %c0_76], %358 {strides = array<i32>} : memref<2x4xf32, #tpu.memory_space<vmem>>, vector<2x4xf32>,
    return
  }
}

</mosaic_0001>

<llo_original>
// kernel: tpu_custom_call.1
$region0: #{tpu_custom_call.1}
  #allocation0 [shape = 'u32[]', space=smem, size = 0x4, offset = 0x4, fixed_abs, tag = 'smem constant byte address 0x4 - core index']
  #allocation1 [shape = 'u32[144,128]{1,0:T(1,128)}', space=vmem, size = 0x12000, scoped, tag = 'internal scratch']
  %s0 = inlined_call_operand.vmem [shape: f32[2,8,4], index: 0, kind: input, shape index: {}]
  %s1 = inlined_call_operand.vmem [shape: f32[4,128], index: 1, kind: input, shape index: {}]
  %s2 = inlined_call_operand.vmem [shape: f32[32,128], index: 2, kind: input, shape index: {}]
  %s3 = inlined_call_operand.vmem [shape: f32[1,128], index: 3, kind: input, shape index: {}]
  %s4 = inlined_call_operand.vmem [shape: f32[64,128], index: 4, kind: input, shape index: {}]
  %s5 = inlined_call_operand.vmem [shape: f32[1,128], index: 5, kind: input, shape index: {}]
  %s6 = inlined_call_operand.hbm [shape: f32[256,128], index: 6, kind: input, shape index: {}]
  %s7 = inlined_call_operand.vmem [shape: f32[1,128], index: 7, kind: input, shape index: {}]
  %s8 = inlined_call_operand.vmem [shape: f32[128,4], index: 8, kind: input, shape index: {}]
  %s9 = inlined_call_operand.vmem [shape: f32[1,4], index: 9, kind: input, shape index: {}]
  %s10 = inlined_call_operand.hbm [shape: f32[2,4], index: 10, kind: output, shape index: {}]
  %s11 = sld [smem:[#allocation0]]
  $region54: #{tpu_custom_call.1} parent=0
    _
  %s13 = ssub.s32 1, %s11
  %s14 = scalar_select 0, %s13, %s11
  $region1: #{tpu_custom_call.1} parent=0
    #allocation2 [shape = 'u8[131072]{0}', space=vmem, size = 0x20000, scoped, tag = 'input window, operand 6, single buffered']
    #allocation3 [shape = 's32[1]{0}', space=sflag, size = 0x4, scoped, tag = 'scoped memory for tpu_custom_call.1']
    #allocation4 [shape = 's32[1]{0}', space=sflag, size = 0x4, scoped, tag = 'scoped memory for tpu_custom_call.1']
    #allocation5 [shape = 'u8[1024]{0}', space=vmem, size = 0x400, scoped, tag = 'output window, operand 0, single buffered']
    %15 = vsyncpa [#allocation3], 0
    %16 = vsyncpa [#allocation4], 0
    // Predicated region
    $region2: #{tpu_custom_call.1} parent=1 // pred_check
      _
    $region3: #{tpu_custom_call.1} parent=1 // pred_check_branch
      %18 = sbr.rel (0) target = $region5
    $region4: #{tpu_custom_call.1} parent=1 // pred_region
      _
    $region5: #{tpu_custom_call.1} parent=1 // pred_fallthru
      _
    // Predicated region
    $region6: #{tpu_custom_call.1} parent=1 // pred_check
      _
    $region7: #{tpu_custom_call.1} parent=1 // pred_check_branch
      %20 = sbr.rel (0) target = $region9
    $region8: #{tpu_custom_call.1} parent=1 // pred_region
      _
    $region9: #{tpu_custom_call.1} parent=1 // pred_fallthru
      _
    // Predicated region
    $region10: #{tpu_custom_call.1} parent=1 // pred_check
      _
    $region11: #{tpu_custom_call.1} parent=1 // pred_check_branch
      %22 = sbr.rel (0) target = $region13
    $region12: #{tpu_custom_call.1} parent=1 // pred_region
      _
    $region13: #{tpu_custom_call.1} parent=1 // pred_fallthru
      _
    // Predicated region
    $region14: #{tpu_custom_call.1} parent=1 // pred_check
      _
    $region15: #{tpu_custom_call.1} parent=1 // pred_check_branch
      %24 = sbr.rel (0) target = $region17
    $region16: #{tpu_custom_call.1} parent=1 // pred_region
      _
    $region17: #{tpu_custom_call.1} parent=1 // pred_fallthru
      _
    // Predicated region
    $region18: #{tpu_custom_call.1} parent=1 // pred_check
      _
    $region19: #{tpu_custom_call.1} parent=1 // pred_check_branch
      %26 = sbr.rel (0) target = $region21
    $region20: #{tpu_custom_call.1} parent=1 // pred_region
      _
    $region21: #{tpu_custom_call.1} parent=1 // pred_fallthru
      _
    // Predicated region
    $region22: #{tpu_custom_call.1} parent=1 // pred_check
      _
    $region23: #{tpu_custom_call.1} parent=1 // pred_check_branch
      %28 = sbr.rel (0) target = $region25
    $region24: #{tpu_custom_call.1} parent=1 // pred_region
      _
    $region25: #{tpu_custom_call.1} parent=1 // pred_fallthru
      _
    // Predicated region
    $region26: #{tpu_custom_call.1} parent=1 // pred_check
      _
    $region27: #{tpu_custom_call.1} parent=1 // pred_check_branch
      %30 = sbr.rel (0) target = $region29
    $region28: #{tpu_custom_call.1} parent=1 // pred_region
      %s32 = ssub.s32 4096, 4096
      %33 = vsyncadd [#allocation3], %s32
      %s34 = sshll.u32 [#allocation2], 4
      %s35 = int_to_ptr.vmem [resolvable:$true] %s34
      %40 = dma.hbm_to_vmem [thread:$0]  %s6, 4096, %s35, [#allocation3], 128, 128, 8
    $region29: #{tpu_custom_call.1} parent=1 // pred_fallthru
      _
    // Predicated region
    $region30: #{tpu_custom_call.1} parent=1 // pred_check
      _
    $region31: #{tpu_custom_call.1} parent=1 // pred_check_branch
      %42 = sbr.rel (0) target = $region33
    $region32: #{tpu_custom_call.1} parent=1 // pred_region
      _
    $region33: #{tpu_custom_call.1} parent=1 // pred_fallthru
      _
    // Predicated region
    $region34: #{tpu_custom_call.1} parent=1 // pred_check
      _
    $region35: #{tpu_custom_call.1} parent=1 // pred_check_branch
      %44 = sbr.rel (0) target = $region37
    $region36: #{tpu_custom_call.1} parent=1 // pred_region
      _
    $region37: #{tpu_custom_call.1} parent=1 // pred_fallthru
      _
    // Predicated region
    $region38: #{tpu_custom_call.1} parent=1 // pred_check
      _
    $region39: #{tpu_custom_call.1} parent=1 // pred_check_branch
      %46 = sbr.rel (0) target = $region41
    $region40: #{tpu_custom_call.1} parent=1 // pred_region
      _
    $region41: #{tpu_custom_call.1} parent=1 // pred_fallthru
      _
    // Predicated region
    $region42: #{tpu_custom_call.1} parent=1 // pred_check
      _
    $region43: #{tpu_custom_call.1} parent=1 // pred_check_branch
      %48 = sbr.rel (0) target = $region45
    $region44: #{tpu_custom_call.1} parent=1 // pred_region
      %49 = dma.done [#allocation3], 4096
    $region45: #{tpu_custom_call.1} parent=1 // pred_fallthru
      _
    %v50 = vld [vmem:[%s2] sm:$0xff]
    %v51 = vld [vmem:[%s2 + $0x8] sm:$0xff]
    %v52 = vld [vmem:[%s2 + $0x10] sm:$0xff]
    %v53 = vld [vmem:[%s2 + $0x18] sm:$0xff]
    %v54 = vld [vmem:[%s4] sm:$0xff]
    %v55 = vld [vmem:[%s4 + $0x8] sm:$0xff]
    %v56 = vld [vmem:[%s4 + $0x10] sm:$0xff]
    %v57 = vld [vmem:[%s4 + $0x18] sm:$0xff]
    %v58 = vld [vmem:[%s4 + $0x20] sm:$0xff]
    %v59 = vld [vmem:[%s4 + $0x28] sm:$0xff]
    %v60 = vld [vmem:[%s4 + $0x30] sm:$0xff]
    %v61 = vld [vmem:[%s4 + $0x38] sm:$0xff]
    %v62 = vld [vmem:[%s5] sm:$0x1]
    %v64 = vlaneseq
    %v65 = vshrl.u32 %v64, 7
    %v66 = vsub.s32 0, %v65
    %v67 = vrot.slane %v62, %v66
    %v69 = vld [vmem:[%s0] sm:$0xff]
    %v70 = vld [vmem:[%s0 + $0x8] sm:$0xff]
    %v71 = vld [vmem:[%s1] sm:$0xf]
    %v72 = vld [vmem:[%s3] sm:$0x1]
    %v74 = vlaneseq
    %v75 = vshrl.u32 %v74, 7
    %v76 = vsub.s32 0, %v75
    %v77 = vrot.slane %v72, %v76
    %vm79 = vcmask 31744
    %v81 = vsel %vm79, %v69, 0
    %v84 = vsel %vm79, %v70, 0
    %vm86 = vcmask 1043456
    %v88 = vsel %vm86, %v71, 0
    %90 = vmatprep.subr.mxu0 0.0
    %91 = vmatpush1.msra.mxu0 %v88
    %92 = vmatprep.subr.mxu0 0.0
    %93 = vmatpush1.msra.mxu0 0.0
    %94 = vmatprep.subr.mxu0 0.0
    %95 = vmatpush1.msra.mxu0 0.0
    %96 = vmatprep.subr.mxu0 0.0
    %97 = vmatpush1.msra.mxu0 0.0
    %98 = vmatprep.subr.mxu0 0.0
    %99 = vmatpush1.msra.mxu0 0.0
    %100 = vmatprep.subr.mxu0 0.0
    %101 = vmatpush1.msra.mxu0 0.0
    %102 = vmatprep.subr.mxu0 0.0
    %103 = vmatpush1.msra.mxu0 0.0
    %104 = vmatprep.subr.mxu0 0.0
    %105 = vmatpush1.msra.mxu0 0.0
    %106 = vmatprep.subr.mxu0 0.0
    %107 = vmatpush1.msra.mxu0 0.0
    %108 = vmatprep.subr.mxu0 0.0
    %109 = vmatpush1.msra.mxu0 0.0
    %110 = vmatprep.subr.mxu0 0.0
    %111 = vmatpush1.msra.mxu0 0.0
    %112 = vmatprep.subr.mxu0 0.0
    %113 = vmatpush1.msra.mxu0 0.0
    %114 = vmatprep.subr.mxu0 0.0
    %115 = vmatpush1.msra.mxu0 0.0
    %116 = vmatprep.subr.mxu0 0.0
    %117 = vmatpush1.msra.mxu0 0.0
    %118 = vmatprep.subr.mxu0 0.0
    %119 = vmatpush1.msra.mxu0 0.0
    %120 = vmatprep.subr.mxu0 0.0
    %121 = vmatpush1.msra.mxu0 0.0
    %122 = vmatprep.subr.mxu0 0.0
    %123 = vmatpush1.msra.mxu0 0.0
    %124 = vmatprep.subr.mxu0 0.0
    %125 = vmatpush1.msra.mxu0 0.0
    %126 = vmatprep.subr.mxu0 0.0
    %127 = vmatpush1.msra.mxu0 0.0
    %128 = vmatprep.subr.mxu0 0.0
    %129 = vmatpush1.msra.mxu0 0.0
    %130 = vmatprep.subr.mxu0 0.0
    %131 = vmatpush1.msra.mxu0 0.0
    %132 = vmatprep.subr.mxu0 0.0
    %133 = vmatpush1.msra.mxu0 0.0
    %134 = vmatprep.subr.mxu0 0.0
    %135 = vmatpush1.msra.mxu0 0.0
    %136 = vmatprep.subr.mxu0 0.0
    %137 = vmatpush1.msra.mxu0 0.0
    %138 = vmatprep.subr.mxu0 0.0
    %139 = vmatpush1.msra.mxu0 0.0
    %140 = vmatprep.subr.mxu0 0.0
    %141 = vmatpush1.msra.mxu0 0.0
    %142 = vmatprep.subr.mxu0 0.0
    %143 = vmatpush1.msra.mxu0 0.0
    %144 = vmatprep.subr.mxu0 0.0
    %145 = vmatpush1.msra.mxu0 0.0
    %146 = vmatprep.subr.mxu0 0.0
    %147 = vmatpush1.msra.mxu0 0.0
    %148 = vmatprep.subr.mxu0 0.0
    %149 = vmatpush1.msra.mxu0 0.0
    %150 = vmatprep.subr.mxu0 0.0
    %151 = vmatpush1.msra.mxu0 0.0
    %152 = vmatprep.subr.mxu0 0.0
    %153 = vmatpush1.msra.mxu0 0.0
    %154 = vmatprep.mubr.f32.mxu0 0.0
    %155 = vmatmul.mubr.f32.gmra.mrb[0].mxu0 %v81
    %v156 = vpop.f32.mrb[0].mxu0
    %v157 = vadd.f32 %v77, %v156
    %v158 = vpop.f32.mrb[0].mxu0
    %159 = vmatprep.mubr.f32.mxu0 0.0
    %160 = vmatmul.mubr.f32.gmra.mrb[0].mxu0 %v84
    %v161 = vpop.f32.mrb[0].mxu0
    %v162 = vadd.f32 %v77, %v161
    %v163 = vpop.f32.mrb[0].mxu0
    %164 = vdwg.mxu0
    %vm165 = vcmask 261120
    %v167 = vsel %vm165, 0.0, 0
    %169 = vmatprep.subr.mxu0 0.0
    %170 = vmatpush1.msra.mxu0 %v50
    %171 = vmatprep.subr.mxu0 0.0
    %172 = vmatpush1.msra.mxu0 %v51
    %173 = vmatprep.subr.mxu0 0.0
    %174 = vmatpush1.msra.mxu0 %v52
    %175 = vmatprep.subr.mxu0 0.0
    %176 = vmatpush1.msra.mxu0 %v53
    %177 = vmatprep.subr.mxu0 0.0
    %178 = vmatpush1.msra.mxu0 0.0
    %179 = vmatprep.subr.mxu0 0.0
    %180 = vmatpush1.msra.mxu0 0.0
    %181 = vmatprep.subr.mxu0 0.0
    %182 = vmatpush1.msra.mxu0 0.0
    %183 = vmatprep.subr.mxu0 0.0
    %184 = vmatpush1.msra.mxu0 0.0
    %185 = vmatprep.subr.mxu0 0.0
    %186 = vmatpush1.msra.mxu0 0.0
    %187 = vmatprep.subr.mxu0 0.0
    %188 = vmatpush1.msra.mxu0 0.0
    %189 = vmatprep.subr.mxu0 0.0
    %190 = vmatpush1.msra.mxu0 0.0
    %191 = vmatprep.subr.mxu0 0.0
    %192 = vmatpush1.msra.mxu0 0.0
    %193 = vmatprep.subr.mxu0 0.0
    %194 = vmatpush1.msra.mxu0 0.0
    %195 = vmatprep.subr.mxu0 0.0
    %196 = vmatpush1.msra.mxu0 0.0
    %197 = vmatprep.subr.mxu0 0.0
    %198 = vmatpush1.msra.mxu0 0.0
    %199 = vmatprep.subr.mxu0 0.0
    %200 = vmatpush1.msra.mxu0 0.0
    %201 = vmatprep.subr.mxu0 0.0
    %202 = vmatpush1.msra.mxu0 0.0
    %203 = vmatprep.subr.mxu0 0.0
    %204 = vmatpush1.msra.mxu0 0.0
    %205 = vmatprep.subr.mxu0 0.0
    %206 = vmatpush1.msra.mxu0 0.0
    %207 = vmatprep.subr.mxu0 0.0
    %208 = vmatpush1.msra.mxu0 0.0
    %209 = vmatprep.subr.mxu0 0.0
    %210 = vmatpush1.msra.mxu0 0.0
    %211 = vmatprep.subr.mxu0 0.0
    %212 = vmatpush1.msra.mxu0 0.0
    %213 = vmatprep.subr.mxu0 0.0
    %214 = vmatpush1.msra.mxu0 0.0
    %215 = vmatprep.subr.mxu0 0.0
    %216 = vmatpush1.msra.mxu0 0.0
    %217 = vmatprep.subr.mxu0 0.0
    %218 = vmatpush1.msra.mxu0 0.0
    %219 = vmatprep.subr.mxu0 0.0
    %220 = vmatpush1.msra.mxu0 0.0
    %221 = vmatprep.subr.mxu0 0.0
    %222 = vmatpush1.msra.mxu0 0.0
    %223 = vmatprep.subr.mxu0 0.0
    %224 = vmatpush1.msra.mxu0 0.0
    %225 = vmatprep.subr.mxu0 0.0
    %226 = vmatpush1.msra.mxu0 0.0
    %227 = vmatprep.subr.mxu0 0.0
    %228 = vmatpush1.msra.mxu0 0.0
    %229 = vmatprep.subr.mxu0 0.0
    %230 = vmatpush1.msra.mxu0 0.0
    %231 = vmatprep.subr.mxu0 0.0
    %232 = vmatpush1.msra.mxu0 0.0
    %233 = vmatprep.mubr.f32.mxu0 0.0
    %234 = vmatmul.mubr.f32.gmra.mrb[0].mxu0 %v167
    %v235 = vpop.f32.mrb[0].mxu0
    %v236 = vadd.f32 0.0, %v235
    %v237 = vpop.f32.mrb[0].mxu0
    %238 = vdwg.mxu0
    %v240 = vrot.slane %v236, 1
    %v243 = vadd.f32 %v157, %v236
    %v244 = vadd.f32 %v162, %v240
    %v245 = vxor.u32 %v243, 2147483648
    %v246 = vxor.u32 %v244, 2147483648
    %v247 = vmul.f32 %v245, 1.442695
    %v248 = vpow.pop %v247
    %v249 = vmul.f32 %v246, 1.442695
    %v250 = vpow.pop %v249
    %v251 = vadd.f32 %v248, 1.0
    %v252 = vadd.f32 %v250, 1.0
    %v253 = vrcp.pop %v251
    %v254 = vmul.f32 1.0, %v253
    %v255 = vrcp.pop %v252
    %v256 = vmul.f32 1.0, %v255
    %v257 = vtanh.pop %v243
    %v258 = vtanh.pop %v244
    %v259 = vmul.f32 %v254, 0.0
    %v260 = vmul.f32 %v256, 0.0
    %263 = vrot.lane.b32.xlu0 %v257, 64
    %v264 = vpop.permute.xlu0 %263
    %265 = vrot.lane.b32.xlu0 %v258, 64
    %v266 = vpop.permute.xlu0 %265
    %v269 = vmul.f32 %v254, %v264
    %v270 = vmul.f32 %v256, %v266
    %273 = vrot.lane.b32.xlu0 %v269, 32
    %v274 = vpop.permute.xlu0 %273
    %275 = vrot.lane.b32.xlu0 %v270, 32
    %v276 = vpop.permute.xlu0 %275
    %v279 = vadd.f32 %v259, %v274
    %v280 = vadd.f32 %v260, %v276
    %v281 = vtanh.pop %v279
    %v282 = vtanh.pop %v280
    %285 = vrot.lane.b32.xlu0 %v281, 64
    %v286 = vpop.permute.xlu0 %285
    %287 = vrot.lane.b32.xlu0 %v282, 64
    %v288 = vpop.permute.xlu0 %287
    %v291 = vmul.f32 %v254, %v286
    %v292 = vmul.f32 %v256, %v288
    %v293 = vmax.f32 %v291, 0.0
    %v294 = vmax.f32 %v292, 0.0
    %v297 = vrot.slane %v294, 7
    %vm298 = vcmask 1041409
    %v299 = vsel %vm298, %v297, %v293
    %300 = vrot.lane.b32.xlu0 %v299, 32
    %v301 = vpop.permute.xlu0 %300
    %v303 = vsel %vm165, %v301, 0.0
    %vm304 = vcmask 523264
    %v306 = vsel %vm304, %v303, 0
    %308 = vmatprep.subr.mxu0 0.0
    %309 = vmatpush1.msra.mxu0 %v54
    %310 = vmatprep.subr.mxu0 0.0
    %311 = vmatpush1.msra.mxu0 %v55
    %312 = vmatprep.subr.mxu0 0.0
    %313 = vmatpush1.msra.mxu0 %v56
    %314 = vmatprep.subr.mxu0 0.0
    %315 = vmatpush1.msra.mxu0 %v57
    %316 = vmatprep.subr.mxu0 0.0
    %317 = vmatpush1.msra.mxu0 %v58
    %318 = vmatprep.subr.mxu0 0.0
    %319 = vmatpush1.msra.mxu0 %v59
    %320 = vmatprep.subr.mxu0 0.0
    %321 = vmatpush1.msra.mxu0 %v60
    %322 = vmatprep.subr.mxu0 0.0
    %323 = vmatpush1.msra.mxu0 %v61
    %324 = vmatprep.subr.mxu0 0.0
    %325 = vmatpush1.msra.mxu0 0.0
    %326 = vmatprep.subr.mxu0 0.0
    %327 = vmatpush1.msra.mxu0 0.0
    %328 = vmatprep.subr.mxu0 0.0
    %329 = vmatpush1.msra.mxu0 0.0
    %330 = vmatprep.subr.mxu0 0.0
    %331 = vmatpush1.msra.mxu0 0.0
    %332 = vmatprep.subr.mxu0 0.0
    %333 = vmatpush1.msra.mxu0 0.0
    %334 = vmatprep.subr.mxu0 0.0
    %335 = vmatpush1.msra.mxu0 0.0
    %336 = vmatprep.subr.mxu0 0.0
    %337 = vmatpush1.msra.mxu0 0.0
    %338 = vmatprep.subr.mxu0 0.0
    %339 = vmatpush1.msra.mxu0 0.0
    %340 = vmatprep.subr.mxu0 0.0
    %341 = vmatpush1.msra.mxu0 0.0
    %342 = vmatprep.subr.mxu0 0.0
    %343 = vmatpush1.msra.mxu0 0.0
    %344 = vmatprep.subr.mxu0 0.0
    %345 = vmatpush1.msra.mxu0 0.0
    %346 = vmatprep.subr.mxu0 0.0
    %347 = vmatpush1.msra.mxu0 0.0
    %348 = vmatprep.subr.mxu0 0.0
    %349 = vmatpush1.msra.mxu0 0.0
    %350 = vmatprep.subr.mxu0 0.0
    %351 = vmatpush1.msra.mxu0 0.0
    %352 = vmatprep.subr.mxu0 0.0
    %353 = vmatpush1.msra.mxu0 0.0
    %354 = vmatprep.subr.mxu0 0.0
    %355 = vmatpush1.msra.mxu0 0.0
    %356 = vmatprep.subr.mxu0 0.0
    %357 = vmatpush1.msra.mxu0 0.0
    %358 = vmatprep.subr.mxu0 0.0
    %359 = vmatpush1.msra.mxu0 0.0
    %360 = vmatprep.subr.mxu0 0.0
    %361 = vmatpush1.msra.mxu0 0.0
    %362 = vmatprep.subr.mxu0 0.0
    %363 = vmatpush1.msra.mxu0 0.0
    %364 = vmatprep.subr.mxu0 0.0
    %365 = vmatpush1.msra.mxu0 0.0
    %366 = vmatprep.subr.mxu0 0.0
    %367 = vmatpush1.msra.mxu0 0.0
    %368 = vmatprep.subr.mxu0 0.0
    %369 = vmatpush1.msra.mxu0 0.0
    %370 = vmatprep.subr.mxu0 0.0
    %371 = vmatpush1.msra.mxu0 0.0
    %372 = vmatprep.mubr.f32.mxu0 0.0
    %373 = vmatmul.mubr.f32.gmra.mrb[0].mxu0 %v306
    %v374 = vpop.f32.mrb[0].mxu0
    %v375 = vadd.f32 %v67, %v374
    %v376 = vpop.f32.mrb[0].mxu0
    %377 = vdwg.mxu0
    %v378 = vxor.u32 %v375, 2147483648
    %v379 = vmul.f32 %v378, 1.442695
    %v380 = vpow.pop %v379
    %v381 = vadd.f32 %v380, 1.0
    %v382 = vrcp.pop %v381
    %v383 = vmul.f32 1.0, %v382
    %v384 = vtanh.pop %v375
    %v385 = vmul.f32 %v383, 0.0
    %387 = vrot.lane.b32.xlu0 %v384, 64
    %v388 = vpop.permute.xlu0 %387
    %v390 = vmul.f32 %v383, %v388
    %392 = vrot.lane.b32.xlu0 %v390, 32
    %v393 = vpop.permute.xlu0 %392
    %v395 = vadd.f32 %v385, %v393
    %v396 = vtanh.pop %v395
    %398 = vrot.lane.b32.xlu0 %v396, 64
    %v399 = vpop.permute.xlu0 %398
    %v401 = vmul.f32 %v383, %v399
    %v402 = vmax.f32 %v401, 0.0
    %v405 = vrot.slane %v292, 7
    %v406 = vsel %vm298, %v405, %v291
    %407 = vrot.lane.b32.xlu0 %v406, 32
    %v408 = vpop.permute.xlu0 %407
    %v409 = vsel %vm165, %v408, 0
    %411 = vmatprep.subr.mxu0 0.0
    %412 = vmatpush1.msra.mxu0 %v50
    %413 = vmatprep.subr.mxu0 0.0
    %414 = vmatpush1.msra.mxu0 %v51
    %415 = vmatprep.subr.mxu0 0.0
    %416 = vmatpush1.msra.mxu0 %v52
    %417 = vmatprep.subr.mxu0 0.0
    %418 = vmatpush1.msra.mxu0 %v53
    %419 = vmatprep.subr.mxu0 0.0
    %420 = vmatpush1.msra.mxu0 0.0
    %421 = vmatprep.subr.mxu0 0.0
    %422 = vmatpush1.msra.mxu0 0.0
    %423 = vmatprep.subr.mxu0 0.0
    %424 = vmatpush1.msra.mxu0 0.0
    %425 = vmatprep.subr.mxu0 0.0
    %426 = vmatpush1.msra.mxu0 0.0
    %427 = vmatprep.subr.mxu0 0.0
    %428 = vmatpush1.msra.mxu0 0.0
    %429 = vmatprep.subr.mxu0 0.0
    %430 = vmatpush1.msra.mxu0 0.0
    %431 = vmatprep.subr.mxu0 0.0
    %432 = vmatpush1.msra.mxu0 0.0
    %433 = vmatprep.subr.mxu0 0.0
    %434 = vmatpush1.msra.mxu0 0.0
    %435 = vmatprep.subr.mxu0 0.0
    %436 = vmatpush1.msra.mxu0 0.0
    %437 = vmatprep.subr.mxu0 0.0
    %438 = vmatpush1.msra.mxu0 0.0
    %439 = vmatprep.subr.mxu0 0.0
    %440 = vmatpush1.msra.mxu0 0.0
    %441 = vmatprep.subr.mxu0 0.0
    %442 = vmatpush1.msra.mxu0 0.0
    %443 = vmatprep.subr.mxu0 0.0
    %444 = vmatpush1.msra.mxu0 0.0
    %445 = vmatprep.subr.mxu0 0.0
    %446 = vmatpush1.msra.mxu0 0.0
    %447 = vmatprep.subr.mxu0 0.0
    %448 = vmatpush1.msra.mxu0 0.0
    %449 = vmatprep.subr.mxu0 0.0
    %450 = vmatpush1.msra.mxu0 0.0
    %451 = vmatprep.subr.mxu0 0.0
    %452 = vmatpush1.msra.mxu0 0.0
    %453 = vmatprep.subr.mxu0 0.0
    %454 = vmatpush1.msra.mxu0 0.0
    %455 = vmatprep.subr.mxu0 0.0
    %456 = vmatpush1.msra.mxu0 0.0
    %457 = vmatprep.subr.mxu0 0.0
    %458 = vmatpush1.msra.mxu0 0.0
    %459 = vmatprep.subr.mxu0 0.0
    %460 = vmatpush1.msra.mxu0 0.0
    %461 = vmatprep.subr.mxu0 0.0
    %462 = vmatpush1.msra.mxu0 0.0
    %463 = vmatprep.subr.mxu0 0.0
    %464 = vmatpush1.msra.mxu0 0.0
    %465 = vmatprep.subr.mxu0 0.0
    %466 = vmatpush1.msra.mxu0 0.0
    %467 = vmatprep.subr.mxu0 0.0
    %468 = vmatpush1.msra.mxu0 0.0
    %469 = vmatprep.subr.mxu0 0.0
    %470 = vmatpush1.msra.mxu0 0.0
    %471 = vmatprep.subr.mxu0 0.0
    %472 = vmatpush1.msra.mxu0 0.0
    %473 = vmatprep.subr.mxu0 0.0
    %474 = vmatpush1.msra.mxu0 0.0
    %475 = vmatprep.mubr.f32.mxu0 0.0
    %476 = vmatmul.mubr.f32.gmra.mrb[0].mxu0 %v409
    %v477 = vpop.f32.mrb[0].mxu0
    %v478 = vadd.f32 0.0, %v477
    %v479 = vpop.f32.mrb[0].mxu0
    %480 = vdwg.mxu0
    %v482 = vrot.slane %v478, 7
    %v485 = vadd.f32 %v157, %v482
    %v486 = vadd.f32 %v162, %v478
    %v487 = vxor.u32 %v485, 2147483648
    %v488 = vxor.u32 %v486, 2147483648
    %v489 = vmul.f32 %v487, 1.442695
    %v490 = vpow.pop %v489
    %v491 = vmul.f32 %v488, 1.442695
    %v492 = vpow.pop %v491
    %v493 = vadd.f32 %v490, 1.0
    %v494 = vadd.f32 %v492, 1.0
    %v495 = vrcp.pop %v493
    %v496 = vmul.f32 1.0, %v495
    %v497 = vrcp.pop %v494
    %v498 = vmul.f32 1.0, %v497
    %v499 = vtanh.pop %v485
    %v500 = vtanh.pop %v486
    %v503 = vrot.slane %v279, 7
    %v504 = vrot.slane %v280, 7
    %v507 = vmul.f32 %v496, %v503
    %v508 = vmul.f32 %v498, %v504
    %511 = vrot.lane.b32.xlu0 %v499, 64
    %v512 = vpop.permute.xlu0 %511
    %513 = vrot.lane.b32.xlu0 %v500, 64
    %v514 = vpop.permute.xlu0 %513
    %v517 = vmul.f32 %v496, %v512
    %v518 = vmul.f32 %v498, %v514
    %521 = vrot.lane.b32.xlu0 %v517, 32
    %v522 = vpop.permute.xlu0 %521
    %523 = vrot.lane.b32.xlu0 %v518, 32
    %v524 = vpop.permute.xlu0 %523
    %v527 = vadd.f32 %v507, %v522
    %v528 = vadd.f32 %v508, %v524
    %v529 = vtanh.pop %v527
    %v530 = vtanh.pop %v528
    %533 = vrot.lane.b32.xlu0 %v529, 64
    %v534 = vpop.permute.xlu0 %533
    %535 = vrot.lane.b32.xlu0 %v530, 64
    %v536 = vpop.permute.xlu0 %535
    %v539 = vmul.f32 %v496, %v534
    %v540 = vmul.f32 %v498, %v536
    %v541 = vmax.f32 %v539, 0.0
    %v542 = vmax.f32 %v540, 0.0
    %v545 = vrot.slane %v542, 7
    %vm546 = vcmask 1042434
    %v547 = vsel %vm546, %v545, %v541
    %548 = vrot.lane.b32.xlu0 %v547, 32
    %v549 = vpop.permute.xlu0 %548
    %v552 = vrot.slane %v401, 7
    %553 = vrot.lane.b32.xlu0 %v552, 64
    %v554 = vpop.permute.xlu0 %553
    %v556 = vsel %vm165, %v549, %v554
    %v558 = vrot.slane %v556, 1
    %v559 = vsel %vm304, %v558, 0
    %561 = vmatprep.subr.mxu0 0.0
    %562 = vmatpush1.msra.mxu0 %v54
    %563 = vmatprep.subr.mxu0 0.0
    %564 = vmatpush1.msra.mxu0 %v55
    %565 = vmatprep.subr.mxu0 0.0
    %566 = vmatpush1.msra.mxu0 %v56
    %567 = vmatprep.subr.mxu0 0.0
    %568 = vmatpush1.msra.mxu0 %v57
    %569 = vmatprep.subr.mxu0 0.0
    %570 = vmatpush1.msra.mxu0 %v58
    %571 = vmatprep.subr.mxu0 0.0
    %572 = vmatpush1.msra.mxu0 %v59
    %573 = vmatprep.subr.mxu0 0.0
    %574 = vmatpush1.msra.mxu0 %v60
    %575 = vmatprep.subr.mxu0 0.0
    %576 = vmatpush1.msra.mxu0 %v61
    %577 = vmatprep.subr.mxu0 0.0
    %578 = vmatpush1.msra.mxu0 0.0
    %579 = vmatprep.subr.mxu0 0.0
    %580 = vmatpush1.msra.mxu0 0.0
    %581 = vmatprep.subr.mxu0 0.0
    %582 = vmatpush1.msra.mxu0 0.0
    %583 = vmatprep.subr.mxu0 0.0
    %584 = vmatpush1.msra.mxu0 0.0
    %585 = vmatprep.subr.mxu0 0.0
    %586 = vmatpush1.msra.mxu0 0.0
    %587 = vmatprep.subr.mxu0 0.0
    %588 = vmatpush1.msra.mxu0 0.0
    %589 = vmatprep.subr.mxu0 0.0
    %590 = vmatpush1.msra.mxu0 0.0
    %591 = vmatprep.subr.mxu0 0.0
    %592 = vmatpush1.msra.mxu0 0.0
    %593 = vmatprep.subr.mxu0 0.0
    %594 = vmatpush1.msra.mxu0 0.0
    %595 = vmatprep.subr.mxu0 0.0
    %596 = vmatpush1.msra.mxu0 0.0
    %597 = vmatprep.subr.mxu0 0.0
    %598 = vmatpush1.msra.mxu0 0.0
    %599 = vmatprep.subr.mxu0 0.0
    %600 = vmatpush1.msra.mxu0 0.0
    %601 = vmatprep.subr.mxu0 0.0
    %602 = vmatpush1.msra.mxu0 0.0
    %603 = vmatprep.subr.mxu0 0.0
    %604 = vmatpush1.msra.mxu0 0.0
    %605 = vmatprep.subr.mxu0 0.0
    %606 = vmatpush1.msra.mxu0 0.0
    %607 = vmatprep.subr.mxu0 0.0
    %608 = vmatpush1.msra.mxu0 0.0
    %609 = vmatprep.subr.mxu0 0.0
    %610 = vmatpush1.msra.mxu0 0.0
    %611 = vmatprep.subr.mxu0 0.0
    %612 = vmatpush1.msra.mxu0 0.0
    %613 = vmatprep.subr.mxu0 0.0
    %614 = vmatpush1.msra.mxu0 0.0
    %615 = vmatprep.subr.mxu0 0.0
    %616 = vmatpush1.msra.mxu0 0.0
    %617 = vmatprep.subr.mxu0 0.0
    %618 = vmatpush1.msra.mxu0 0.0
    %619 = vmatprep.subr.mxu0 0.0
    %620 = vmatpush1.msra.mxu0 0.0
    %621 = vmatprep.subr.mxu0 0.0
    %622 = vmatpush1.msra.mxu0 0.0
    %623 = vmatprep.subr.mxu0 0.0
    %624 = vmatpush1.msra.mxu0 0.0
    %625 = vmatprep.mubr.f32.mxu0 0.0
    %626 = vmatmul.mubr.f32.gmra.mrb[0].mxu0 %v559
    %v627 = vpop.f32.mrb[0].mxu0
    %v628 = vadd.f32 %v67, %v627
    %v629 = vpop.f32.mrb[0].mxu0
    %630 = vdwg.mxu0
    %v631 = vxor.u32 %v628, 2147483648
    %v632 = vmul.f32 %v631, 1.442695
    %v633 = vpow.pop %v632
    %v634 = vadd.f32 %v633, 1.0
    %v635 = vrcp.pop %v634
    %v636 = vmul.f32 1.0, %v635
    %v637 = vtanh.pop %v628
    %v638 = vmul.f32 %v636, %v395
    %640 = vrot.lane.b32.xlu0 %v637, 64
    %v641 = vpop.permute.xlu0 %640
    %v643 = vmul.f32 %v636, %v641
    %645 = vrot.lane.b32.xlu0 %v643, 32
    %v646 = vpop.permute.xlu0 %645
    %v648 = vadd.f32 %v638, %v646
    %v649 = vtanh.pop %v648
    %651 = vrot.lane.b32.xlu0 %v649, 64
    %v652 = vpop.permute.xlu0 %651
    %v654 = vmul.f32 %v636, %v652
    %v655 = vmax.f32 %v654, 0.0
    %v658 = vrot.slane %v539, 1
    %v659 = vsel %vm298, %v540, %v658
    %660 = vrot.lane.b32.xlu0 %v659, 32
    %v661 = vpop.permute.xlu0 %660
    %v662 = vsel %vm165, %v661, 0
    %664 = vmatprep.subr.mxu0 0.0
    %665 = vmatpush1.msra.mxu0 %v50
    %666 = vmatprep.subr.mxu0 0.0
    %667 = vmatpush1.msra.mxu0 %v51
    %668 = vmatprep.subr.mxu0 0.0
    %669 = vmatpush1.msra.mxu0 %v52
    %670 = vmatprep.subr.mxu0 0.0
    %671 = vmatpush1.msra.mxu0 %v53
    %672 = vmatprep.subr.mxu0 0.0
    %673 = vmatpush1.msra.mxu0 0.0
    %674 = vmatprep.subr.mxu0 0.0
    %675 = vmatpush1.msra.mxu0 0.0
    %676 = vmatprep.subr.mxu0 0.0
    %677 = vmatpush1.msra.mxu0 0.0
    %678 = vmatprep.subr.mxu0 0.0
    %679 = vmatpush1.msra.mxu0 0.0
    %680 = vmatprep.subr.mxu0 0.0
    %681 = vmatpush1.msra.mxu0 0.0
    %682 = vmatprep.subr.mxu0 0.0
    %683 = vmatpush1.msra.mxu0 0.0
    %684 = vmatprep.subr.mxu0 0.0
    %685 = vmatpush1.msra.mxu0 0.0
    %686 = vmatprep.subr.mxu0 0.0
    %687 = vmatpush1.msra.mxu0 0.0
    %688 = vmatprep.subr.mxu0 0.0
    %689 = vmatpush1.msra.mxu0 0.0
    %690 = vmatprep.subr.mxu0 0.0
    %691 = vmatpush1.msra.mxu0 0.0
    %692 = vmatprep.subr.mxu0 0.0
    %693 = vmatpush1.msra.mxu0 0.0
    %694 = vmatprep.subr.mxu0 0.0
    %695 = vmatpush1.msra.mxu0 0.0
    %696 = vmatprep.subr.mxu0 0.0
    %697 = vmatpush1.msra.mxu0 0.0
    %698 = vmatprep.subr.mxu0 0.0
    %699 = vmatpush1.msra.mxu0 0.0
    %700 = vmatprep.subr.mxu0 0.0
    %701 = vmatpush1.msra.mxu0 0.0
    %702 = vmatprep.subr.mxu0 0.0
    %703 = vmatpush1.msra.mxu0 0.0
    %704 = vmatprep.subr.mxu0 0.0
    %705 = vmatpush1.msra.mxu0 0.0
    %706 = vmatprep.subr.mxu0 0.0
    %707 = vmatpush1.msra.mxu0 0.0
    %708 = vmatprep.subr.mxu0 0.0
    %709 = vmatpush1.msra.mxu0 0.0
    %710 = vmatprep.subr.mxu0 0.0
    %711 = vmatpush1.msra.mxu0 0.0
    %712 = vmatprep.subr.mxu0 0.0
    %713 = vmatpush1.msra.mxu0 0.0
    %714 = vmatprep.subr.mxu0 0.0
    %715 = vmatpush1.msra.mxu0 0.0
    %716 = vmatprep.subr.mxu0 0.0
    %717 = vmatpush1.msra.mxu0 0.0
    %718 = vmatprep.subr.mxu0 0.0
    %719 = vmatpush1.msra.mxu0 0.0
    %720 = vmatprep.subr.mxu0 0.0
    %721 = vmatpush1.msra.mxu0 0.0
    %722 = vmatprep.subr.mxu0 0.0
    %723 = vmatpush1.msra.mxu0 0.0
    %724 = vmatprep.subr.mxu0 0.0
    %725 = vmatpush1.msra.mxu0 0.0
    %726 = vmatprep.subr.mxu0 0.0
    %727 = vmatpush1.msra.mxu0 0.0
    %728 = vmatprep.mubr.f32.mxu0 0.0
    %729 = vmatmul.mubr.f32.gmra.mrb[0].mxu0 %v662
    %v730 = vpop.f32.mrb[0].mxu0
    %v731 = vadd.f32 0.0, %v730
    %v732 = vpop.f32.mrb[0].mxu0
    %733 = vdwg.mxu0
    %v735 = vrot.slane %v731, 6
    %v736 = vrot.slane %v731, 7
    %v739 = vadd.f32 %v157, %v735
    %v740 = vadd.f32 %v162, %v736
    %v741 = vxor.u32 %v739, 2147483648
    %v742 = vxor.u32 %v740, 2147483648
    %v743 = vmul.f32 %v741, 1.442695
    %v744 = vpow.pop %v743
    %v745 = vmul.f32 %v742, 1.442695
    %v746 = vpow.pop %v745
    %v747 = vadd.f32 %v744, 1.0
    %v748 = vadd.f32 %v746, 1.0
    %v749 = vrcp.pop %v747
    %v750 = vmul.f32 1.0, %v749
    %v751 = vrcp.pop %v748
    %v752 = vmul.f32 1.0, %v751
    %v753 = vtanh.pop %v739
    %v754 = vtanh.pop %v740
    %v757 = vrot.slane %v527, 7
    %v758 = vrot.slane %v528, 7
    %v761 = vmul.f32 %v750, %v757
    %v762 = vmul.f32 %v752, %v758
    %765 = vrot.lane.b32.xlu0 %v753, 64
    %v766 = vpop.permute.xlu0 %765
    %767 = vrot.lane.b32.xlu0 %v754, 64
    %v768 = vpop.permute.xlu0 %767
    %v771 = vmul.f32 %v750, %v766
    %v772 = vmul.f32 %v752, %v768
    %775 = vrot.lane.b32.xlu0 %v771, 32
    %v776 = vpop.permute.xlu0 %775
    %777 = vrot.lane.b32.xlu0 %v772, 32
    %v778 = vpop.permute.xlu0 %777
    %v781 = vadd.f32 %v761, %v776
    %v782 = vadd.f32 %v762, %v778
    %v783 = vtanh.pop %v781
    %v784 = vtanh.pop %v782
    %787 = vrot.lane.b32.xlu0 %v783, 64
    %v788 = vpop.permute.xlu0 %787
    %789 = vrot.lane.b32.xlu0 %v784, 64
    %v790 = vpop.permute.xlu0 %789
    %v793 = vmul.f32 %v750, %v788
    %v794 = vmul.f32 %v752, %v790
    %v795 = vmax.f32 %v793, 0.0
    %v796 = vmax.f32 %v794, 0.0
    %v799 = vrot.slane %v796, 7
    %vm800 = vcmask 1043459
    %v801 = vsel %vm800, %v799, %v795
    %802 = vrot.lane.b32.xlu0 %v801, 32
    %v803 = vpop.permute.xlu0 %802
    %v806 = vrot.slane %v654, 6
    %807 = vrot.lane.b32.xlu0 %v806, 64
    %v808 = vpop.permute.xlu0 %807
    %v810 = vsel %vm165, %v803, %v808
    %v812 = vrot.slane %v810, 2
    %v813 = vsel %vm304, %v812, 0
    %815 = vmatprep.subr.mxu0 0.0
    %816 = vmatpush1.msra.mxu0 %v54
    %817 = vmatprep.subr.mxu0 0.0
    %818 = vmatpush1.msra.mxu0 %v55
    %819 = vmatprep.subr.mxu0 0.0
    %820 = vmatpush1.msra.mxu0 %v56
    %821 = vmatprep.subr.mxu0 0.0
    %822 = vmatpush1.msra.mxu0 %v57
    %823 = vmatprep.subr.mxu0 0.0
    %824 = vmatpush1.msra.mxu0 %v58
    %825 = vmatprep.subr.mxu0 0.0
    %826 = vmatpush1.msra.mxu0 %v59
    %827 = vmatprep.subr.mxu0 0.0
    %828 = vmatpush1.msra.mxu0 %v60
    %829 = vmatprep.subr.mxu0 0.0
    %830 = vmatpush1.msra.mxu0 %v61
    %831 = vmatprep.subr.mxu0 0.0
    %832 = vmatpush1.msra.mxu0 0.0
    %833 = vmatprep.subr.mxu0 0.0
    %834 = vmatpush1.msra.mxu0 0.0
    %835 = vmatprep.subr.mxu0 0.0
    %836 = vmatpush1.msra.mxu0 0.0
    %837 = vmatprep.subr.mxu0 0.0
    %838 = vmatpush1.msra.mxu0 0.0
    %839 = vmatprep.subr.mxu0 0.0
    %840 = vmatpush1.msra.mxu0 0.0
    %841 = vmatprep.subr.mxu0 0.0
    %842 = vmatpush1.msra.mxu0 0.0
    %843 = vmatprep.subr.mxu0 0.0
    %844 = vmatpush1.msra.mxu0 0.0
    %845 = vmatprep.subr.mxu0 0.0
    %846 = vmatpush1.msra.mxu0 0.0
    %847 = vmatprep.subr.mxu0 0.0
    %848 = vmatpush1.msra.mxu0 0.0
    %849 = vmatprep.subr.mxu0 0.0
    %850 = vmatpush1.msra.mxu0 0.0
    %851 = vmatprep.subr.mxu0 0.0
    %852 = vmatpush1.msra.mxu0 0.0
    %853 = vmatprep.subr.mxu0 0.0
    %854 = vmatpush1.msra.mxu0 0.0
    %855 = vmatprep.subr.mxu0 0.0
    %856 = vmatpush1.msra.mxu0 0.0
    %857 = vmatprep.subr.mxu0 0.0
    %858 = vmatpush1.msra.mxu0 0.0
    %859 = vmatprep.subr.mxu0 0.0
    %860 = vmatpush1.msra.mxu0 0.0
    %861 = vmatprep.subr.mxu0 0.0
    %862 = vmatpush1.msra.mxu0 0.0
    %863 = vmatprep.subr.mxu0 0.0
    %864 = vmatpush1.msra.mxu0 0.0
    %865 = vmatprep.subr.mxu0 0.0
    %866 = vmatpush1.msra.mxu0 0.0
    %867 = vmatprep.subr.mxu0 0.0
    %868 = vmatpush1.msra.mxu0 0.0
    %869 = vmatprep.subr.mxu0 0.0
    %870 = vmatpush1.msra.mxu0 0.0
    %871 = vmatprep.subr.mxu0 0.0
    %872 = vmatpush1.msra.mxu0 0.0
    %873 = vmatprep.subr.mxu0 0.0
    %874 = vmatpush1.msra.mxu0 0.0
    %875 = vmatprep.subr.mxu0 0.0
    %876 = vmatpush1.msra.mxu0 0.0
    %877 = vmatprep.subr.mxu0 0.0
    %878 = vmatpush1.msra.mxu0 0.0
    %879 = vmatprep.mubr.f32.mxu0 0.0
    %880 = vmatmul.mubr.f32.gmra.mrb[0].mxu0 %v813
    %v881 = vpop.f32.mrb[0].mxu0
    %v882 = vadd.f32 %v67, %v881
    %v883 = vpop.f32.mrb[0].mxu0
    %884 = vdwg.mxu0
    %v885 = vxor.u32 %v882, 2147483648
    %v886 = vmul.f32 %v885, 1.442695
    %v887 = vpow.pop %v886
    %v888 = vadd.f32 %v887, 1.0
    %v889 = vrcp.pop %v888
    %v890 = vmul.f32 1.0, %v889
    %v891 = vtanh.pop %v882
    %v892 = vmul.f32 %v890, %v648
    %894 = vrot.lane.b32.xlu0 %v891, 64
    %v895 = vpop.permute.xlu0 %894
    %v897 = vmul.f32 %v890, %v895
    %899 = vrot.lane.b32.xlu0 %v897, 32
    %v900 = vpop.permute.xlu0 %899
    %v902 = vadd.f32 %v892, %v900
    %v903 = vtanh.pop %v902
    %905 = vrot.lane.b32.xlu0 %v903, 64
    %v906 = vpop.permute.xlu0 %905
    %v908 = vmul.f32 %v890, %v906
    %v909 = vmax.f32 %v908, 0.0
    %v912 = vrot.slane %v793, 2
    %v913 = vrot.slane %v794, 1
    %v914 = vsel %vm298, %v913, %v912
    %915 = vrot.lane.b32.xlu0 %v914, 32
    %v916 = vpop.permute.xlu0 %915
    %v917 = vsel %vm165, %v916, 0
    %919 = vmatprep.subr.mxu0 0.0
    %920 = vmatpush1.msra.mxu0 %v50
    %921 = vmatprep.subr.mxu0 0.0
    %922 = vmatpush1.msra.mxu0 %v51
    %923 = vmatprep.subr.mxu0 0.0
    %924 = vmatpush1.msra.mxu0 %v52
    %925 = vmatprep.subr.mxu0 0.0
    %926 = vmatpush1.msra.mxu0 %v53
    %927 = vmatprep.subr.mxu0 0.0
    %928 = vmatpush1.msra.mxu0 0.0
    %929 = vmatprep.subr.mxu0 0.0
    %930 = vmatpush1.msra.mxu0 0.0
    %931 = vmatprep.subr.mxu0 0.0
    %932 = vmatpush1.msra.mxu0 0.0
    %933 = vmatprep.subr.mxu0 0.0
    %934 = vmatpush1.msra.mxu0 0.0
    %935 = vmatprep.subr.mxu0 0.0
    %936 = vmatpush1.msra.mxu0 0.0
    %937 = vmatprep.subr.mxu0 0.0
    %938 = vmatpush1.msra.mxu0 0.0
    %939 = vmatprep.subr.mxu0 0.0
    %940 = vmatpush1.msra.mxu0 0.0
    %941 = vmatprep.subr.mxu0 0.0
    %942 = vmatpush1.msra.mxu0 0.0
    %943 = vmatprep.subr.mxu0 0.0
    %944 = vmatpush1.msra.mxu0 0.0
    %945 = vmatprep.subr.mxu0 0.0
    %946 = vmatpush1.msra.mxu0 0.0
    %947 = vmatprep.subr.mxu0 0.0
    %948 = vmatpush1.msra.mxu0 0.0
    %949 = vmatprep.subr.mxu0 0.0
    %950 = vmatpush1.msra.mxu0 0.0
    %951 = vmatprep.subr.mxu0 0.0
    %952 = vmatpush1.msra.mxu0 0.0
    %953 = vmatprep.subr.mxu0 0.0
    %954 = vmatpush1.msra.mxu0 0.0
    %955 = vmatprep.subr.mxu0 0.0
    %956 = vmatpush1.msra.mxu0 0.0
    %957 = vmatprep.subr.mxu0 0.0
    %958 = vmatpush1.msra.mxu0 0.0
    %959 = vmatprep.subr.mxu0 0.0
    %960 = vmatpush1.msra.mxu0 0.0
    %961 = vmatprep.subr.mxu0 0.0
    %962 = vmatpush1.msra.mxu0 0.0
    %963 = vmatprep.subr.mxu0 0.0
    %964 = vmatpush1.msra.mxu0 0.0
    %965 = vmatprep.subr.mxu0 0.0
    %966 = vmatpush1.msra.mxu0 0.0
    %967 = vmatprep.subr.mxu0 0.0
    %968 = vmatpush1.msra.mxu0 0.0
    %969 = vmatprep.subr.mxu0 0.0
    %970 = vmatpush1.msra.mxu0 0.0
    %971 = vmatprep.subr.mxu0 0.0
    %972 = vmatpush1.msra.mxu0 0.0
    %973 = vmatprep.subr.mxu0 0.0
    %974 = vmatpush1.msra.mxu0 0.0
    %975 = vmatprep.subr.mxu0 0.0
    %976 = vmatpush1.msra.mxu0 0.0
    %977 = vmatprep.subr.mxu0 0.0
    %978 = vmatpush1.msra.mxu0 0.0
    %979 = vmatprep.subr.mxu0 0.0
    %980 = vmatpush1.msra.mxu0 0.0
    %981 = vmatprep.subr.mxu0 0.0
    %982 = vmatpush1.msra.mxu0 0.0
    %983 = vmatprep.mubr.f32.mxu0 0.0
    %984 = vmatmul.mubr.f32.gmra.mrb[0].mxu0 %v917
    %v985 = vpop.f32.mrb[0].mxu0
    %v986 = vadd.f32 0.0, %v985
    %v987 = vpop.f32.mrb[0].mxu0
    %988 = vdwg.mxu0
    %v990 = vrot.slane %v986, 5
    %v991 = vrot.slane %v986, 6
    %v994 = vadd.f32 %v157, %v990
    %v995 = vadd.f32 %v162, %v991
    %v996 = vxor.u32 %v994, 2147483648
    %v997 = vxor.u32 %v995, 2147483648
    %v998 = vmul.f32 %v996, 1.442695
    %v999 = vpow.pop %v998
    %v1000 = vmul.f32 %v997, 1.442695
    %v1001 = vpow.pop %v1000
    %v1002 = vadd.f32 %v999, 1.0
    %v1003 = vadd.f32 %v1001, 1.0
    %v1004 = vrcp.pop %v1002
    %v1005 = vmul.f32 1.0, %v1004
    %v1006 = vrcp.pop %v1003
    %v1007 = vmul.f32 1.0, %v1006
    %v1008 = vtanh.pop %v994
    %v1009 = vtanh.pop %v995
    %v1012 = vrot.slane %v781, 7
    %v1013 = vrot.slane %v782, 7
    %v1016 = vmul.f32 %v1005, %v1012
    %v1017 = vmul.f32 %v1007, %v1013
    %1020 = vrot.lane.b32.xlu0 %v1008, 64
    %v1021 = vpop.permute.xlu0 %1020
    %1022 = vrot.lane.b32.xlu0 %v1009, 64
    %v1023 = vpop.permute.xlu0 %1022
    %v1026 = vmul.f32 %v1005, %v1021
    %v1027 = vmul.f32 %v1007, %v1023
    %1030 = vrot.lane.b32.xlu0 %v1026, 32
    %v1031 = vpop.permute.xlu0 %1030
    %1032 = vrot.lane.b32.xlu0 %v1027, 32
    %v1033 = vpop.permute.xlu0 %1032
    %v1036 = vadd.f32 %v1016, %v1031
    %v1037 = vadd.f32 %v1017, %v1033
    %v1038 = vtanh.pop %v1036
    %v1039 = vtanh.pop %v1037
    %1042 = vrot.lane.b32.xlu0 %v1038, 64
    %v1043 = vpop.permute.xlu0 %1042
    %1044 = vrot.lane.b32.xlu0 %v1039, 64
    %v1045 = vpop.permute.xlu0 %1044
    %v1048 = vmul.f32 %v1005, %v1043
    %v1049 = vmul.f32 %v1007, %v1045
    %v1050 = vmax.f32 %v1048, 0.0
    %v1051 = vmax.f32 %v1049, 0.0
    %v1054 = vrot.slane %v1051, 7
    %vm1055 = vcmask 1044484
    %v1056 = vsel %vm1055, %v1054, %v1050
    %1057 = vrot.lane.b32.xlu0 %v1056, 32
    %v1058 = vpop.permute.xlu0 %1057
    %v1061 = vrot.slane %v908, 5
    %1062 = vrot.lane.b32.xlu0 %v1061, 64
    %v1063 = vpop.permute.xlu0 %1062
    %v1065 = vsel %vm165, %v1058, %v1063
    %v1067 = vrot.slane %v1065, 3
    %v1068 = vsel %vm304, %v1067, 0
    %1070 = vmatprep.subr.mxu0 0.0
    %1071 = vmatpush1.msra.mxu0 %v54
    %1072 = vmatprep.subr.mxu0 0.0
    %1073 = vmatpush1.msra.mxu0 %v55
    %1074 = vmatprep.subr.mxu0 0.0
    %1075 = vmatpush1.msra.mxu0 %v56
    %1076 = vmatprep.subr.mxu0 0.0
    %1077 = vmatpush1.msra.mxu0 %v57
    %1078 = vmatprep.subr.mxu0 0.0
    %1079 = vmatpush1.msra.mxu0 %v58
    %1080 = vmatprep.subr.mxu0 0.0
    %1081 = vmatpush1.msra.mxu0 %v59
    %1082 = vmatprep.subr.mxu0 0.0
    %1083 = vmatpush1.msra.mxu0 %v60
    %1084 = vmatprep.subr.mxu0 0.0
    %1085 = vmatpush1.msra.mxu0 %v61
    %1086 = vmatprep.subr.mxu0 0.0
    %1087 = vmatpush1.msra.mxu0 0.0
    %1088 = vmatprep.subr.mxu0 0.0
    %1089 = vmatpush1.msra.mxu0 0.0
    %1090 = vmatprep.subr.mxu0 0.0
    %1091 = vmatpush1.msra.mxu0 0.0
    %1092 = vmatprep.subr.mxu0 0.0
    %1093 = vmatpush1.msra.mxu0 0.0
    %1094 = vmatprep.subr.mxu0 0.0
    %1095 = vmatpush1.msra.mxu0 0.0
    %1096 = vmatprep.subr.mxu0 0.0
    %1097 = vmatpush1.msra.mxu0 0.0
    %1098 = vmatprep.subr.mxu0 0.0
    %1099 = vmatpush1.msra.mxu0 0.0
    %1100 = vmatprep.subr.mxu0 0.0
    %1101 = vmatpush1.msra.mxu0 0.0
    %1102 = vmatprep.subr.mxu0 0.0
    %1103 = vmatpush1.msra.mxu0 0.0
    %1104 = vmatprep.subr.mxu0 0.0
    %1105 = vmatpush1.msra.mxu0 0.0
    %1106 = vmatprep.subr.mxu0 0.0
    %1107 = vmatpush1.msra.mxu0 0.0
    %1108 = vmatprep.subr.mxu0 0.0
    %1109 = vmatpush1.msra.mxu0 0.0
    %1110 = vmatprep.subr.mxu0 0.0
    %1111 = vmatpush1.msra.mxu0 0.0
    %1112 = vmatprep.subr.mxu0 0.0
    %1113 = vmatpush1.msra.mxu0 0.0
    %1114 = vmatprep.subr.mxu0 0.0
    %1115 = vmatpush1.msra.mxu0 0.0
    %1116 = vmatprep.subr.mxu0 0.0
    %1117 = vmatpush1.msra.mxu0 0.0
    %1118 = vmatprep.subr.mxu0 0.0
    %1119 = vmatpush1.msra.mxu0 0.0
    %1120 = vmatprep.subr.mxu0 0.0
    %1121 = vmatpush1.msra.mxu0 0.0
    %1122 = vmatprep.subr.mxu0 0.0
    %1123 = vmatpush1.msra.mxu0 0.0
    %1124 = vmatprep.subr.mxu0 0.0
    %1125 = vmatpush1.msra.mxu0 0.0
    %1126 = vmatprep.subr.mxu0 0.0
    %1127 = vmatpush1.msra.mxu0 0.0
    %1128 = vmatprep.subr.mxu0 0.0
    %1129 = vmatpush1.msra.mxu0 0.0
    %1130 = vmatprep.subr.mxu0 0.0
    %1131 = vmatpush1.msra.mxu0 0.0
    %1132 = vmatprep.subr.mxu0 0.0
    %1133 = vmatpush1.msra.mxu0 0.0
    %1134 = vmatprep.mubr.f32.mxu0 0.0
    %1135 = vmatmul.mubr.f32.gmra.mrb[0].mxu0 %v1068
    %v1136 = vpop.f32.mrb[0].mxu0
    %v1137 = vadd.f32 %v67, %v1136
    %v1138 = vpop.f32.mrb[0].mxu0
    %1139 = vdwg.mxu0
    %v1140 = vxor.u32 %v1137, 2147483648
    %v1141 = vmul.f32 %v1140, 1.442695
    %v1142 = vpow.pop %v1141
    %v1143 = vadd.f32 %v1142, 1.0
    %v1144 = vrcp.pop %v1143
    %v1145 = vmul.f32 1.0, %v1144
    %v1146 = vtanh.pop %v1137
    %v1147 = vmul.f32 %v1145, %v902
    %1149 = vrot.lane.b32.xlu0 %v1146, 64
    %v1150 = vpop.permute.xlu0 %1149
    %v1152 = vmul.f32 %v1145, %v1150
    %1154 = vrot.lane.b32.xlu0 %v1152, 32
    %v1155 = vpop.permute.xlu0 %1154
    %v1157 = vadd.f32 %v1147, %v1155
    %v1158 = vtanh.pop %v1157
    %1160 = vrot.lane.b32.xlu0 %v1158, 64
    %v1161 = vpop.permute.xlu0 %1160
    %v1163 = vmul.f32 %v1145, %v1161
    %v1164 = vmax.f32 %v1163, 0.0
    %v1167 = vrot.slane %v1048, 3
    %v1168 = vrot.slane %v1049, 2
    %v1169 = vsel %vm298, %v1168, %v1167
    %1170 = vrot.lane.b32.xlu0 %v1169, 32
    %v1171 = vpop.permute.xlu0 %1170
    %v1172 = vsel %vm165, %v1171, 0
    %1174 = vmatprep.subr.mxu0 0.0
    %1175 = vmatpush1.msra.mxu0 %v50
    %1176 = vmatprep.subr.mxu0 0.0
    %1177 = vmatpush1.msra.mxu0 %v51
    %1178 = vmatprep.subr.mxu0 0.0
    %1179 = vmatpush1.msra.mxu0 %v52
    %1180 = vmatprep.subr.mxu0 0.0
    %1181 = vmatpush1.msra.mxu0 %v53
    %1182 = vmatprep.subr.mxu0 0.0
    %1183 = vmatpush1.msra.mxu0 0.0
    %1184 = vmatprep.subr.mxu0 0.0
    %1185 = vmatpush1.msra.mxu0 0.0
    %1186 = vmatprep.subr.mxu0 0.0
    %1187 = vmatpush1.msra.mxu0 0.0
    %1188 = vmatprep.subr.mxu0 0.0
    %1189 = vmatpush1.msra.mxu0 0.0
    %1190 = vmatprep.subr.mxu0 0.0
    %1191 = vmatpush1.msra.mxu0 0.0
    %1192 = vmatprep.subr.mxu0 0.0
    %1193 = vmatpush1.msra.mxu0 0.0
    %1194 = vmatprep.subr.mxu0 0.0
    %1195 = vmatpush1.msra.mxu0 0.0
    %1196 = vmatprep.subr.mxu0 0.0
    %1197 = vmatpush1.msra.mxu0 0.0
    %1198 = vmatprep.subr.mxu0 0.0
    %1199 = vmatpush1.msra.mxu0 0.0
    %1200 = vmatprep.subr.mxu0 0.0
    %1201 = vmatpush1.msra.mxu0 0.0
    %1202 = vmatprep.subr.mxu0 0.0
    %1203 = vmatpush1.msra.mxu0 0.0
    %1204 = vmatprep.subr.mxu0 0.0
    %1205 = vmatpush1.msra.mxu0 0.0
    %1206 = vmatprep.subr.mxu0 0.0
    %1207 = vmatpush1.msra.mxu0 0.0
    %1208 = vmatprep.subr.mxu0 0.0
    %1209 = vmatpush1.msra.mxu0 0.0
    %1210 = vmatprep.subr.mxu0 0.0
    %1211 = vmatpush1.msra.mxu0 0.0
    %1212 = vmatprep.subr.mxu0 0.0
    %1213 = vmatpush1.msra.mxu0 0.0
    %1214 = vmatprep.subr.mxu0 0.0
    %1215 = vmatpush1.msra.mxu0 0.0
    %1216 = vmatprep.subr.mxu0 0.0
    %1217 = vmatpush1.msra.mxu0 0.0
    %1218 = vmatprep.subr.mxu0 0.0
    %1219 = vmatpush1.msra.mxu0 0.0
    %1220 = vmatprep.subr.mxu0 0.0
    %1221 = vmatpush1.msra.mxu0 0.0
    %1222 = vmatprep.subr.mxu0 0.0
    %1223 = vmatpush1.msra.mxu0 0.0
    %1224 = vmatprep.subr.mxu0 0.0
    %1225 = vmatpush1.msra.mxu0 0.0
    %1226 = vmatprep.subr.mxu0 0.0
    %1227 = vmatpush1.msra.mxu0 0.0
    %1228 = vmatprep.subr.mxu0 0.0
    %1229 = vmatpush1.msra.mxu0 0.0
    %1230 = vmatprep.subr.mxu0 0.0
    %1231 = vmatpush1.msra.mxu0 0.0
    %1232 = vmatprep.subr.mxu0 0.0
    %1233 = vmatpush1.msra.mxu0 0.0
    %1234 = vmatprep.subr.mxu0 0.0
    %1235 = vmatpush1.msra.mxu0 0.0
    %1236 = vmatprep.subr.mxu0 0.0
    %1237 = vmatpush1.msra.mxu0 0.0
    %1238 = vmatprep.mubr.f32.mxu0 0.0
    %1239 = vmatmul.mubr.f32.gmra.mrb[0].mxu0 %v1172
    %v1240 = vpop.f32.mrb[0].mxu0
    %v1241 = vadd.f32 0.0, %v1240
    %v1242 = vpop.f32.mrb[0].mxu0
    %1243 = vdwg.mxu0
    %v1245 = vrot.slane %v1241, 4
    %v1246 = vrot.slane %v1241, 5
    %v1249 = vadd.f32 %v157, %v1245
    %v1250 = vadd.f32 %v162, %v1246
    %v1251 = vxor.u32 %v1249, 2147483648
    %v1252 = vxor.u32 %v1250, 2147483648
    %v1253 = vmul.f32 %v1251, 1.442695
    %v1254 = vpow.pop %v1253
    %v1255 = vmul.f32 %v1252, 1.442695
    %v1256 = vpow.pop %v1255
    %v1257 = vadd.f32 %v1254, 1.0
    %v1258 = vadd.f32 %v1256, 1.0
    %v1259 = vrcp.pop %v1257
    %v1260 = vmul.f32 1.0, %v1259
    %v1261 = vrcp.pop %v1258
    %v1262 = vmul.f32 1.0, %v1261
    %v1263 = vtanh.pop %v1249
    %v1264 = vtanh.pop %v1250
    %v1267 = vrot.slane %v1036, 7
    %v1268 = vrot.slane %v1037, 7
    %v1271 = vmul.f32 %v1260, %v1267
    %v1272 = vmul.f32 %v1262, %v1268
    %1275 = vrot.lane.b32.xlu0 %v1263, 64
    %v1276 = vpop.permute.xlu0 %1275
    %1277 = vrot.lane.b32.xlu0 %v1264, 64
    %v1278 = vpop.permute.xlu0 %1277
    %v1281 = vmul.f32 %v1260, %v1276
    %v1282 = vmul.f32 %v1262, %v1278
    %1285 = vrot.lane.b32.xlu0 %v1281, 32
    %v1286 = vpop.permute.xlu0 %1285
    %1287 = vrot.lane.b32.xlu0 %v1282, 32
    %v1288 = vpop.permute.xlu0 %1287
    %v1291 = vadd.f32 %v1271, %v1286
    %v1292 = vadd.f32 %v1272, %v1288
    %v1293 = vtanh.pop %v1291
    %v1294 = vtanh.pop %v1292
    %1297 = vrot.lane.b32.xlu0 %v1293, 64
    %v1298 = vpop.permute.xlu0 %1297
    %1299 = vrot.lane.b32.xlu0 %v1294, 64
    %v1300 = vpop.permute.xlu0 %1299
    %v1303 = vmul.f32 %v1260, %v1298
    %v1304 = vmul.f32 %v1262, %v1300
    %v1305 = vmax.f32 %v1303, 0.0
    %v1306 = vmax.f32 %v1304, 0.0
    %v1309 = vrot.slane %v1306, 7
    %vm1310 = vcmask 1045509
    %v1311 = vsel %vm1310, %v1309, %v1305
    %1312 = vrot.lane.b32.xlu0 %v1311, 32
    %v1313 = vpop.permute.xlu0 %1312
    %v1316 = vrot.slane %v1163, 4
    %1317 = vrot.lane.b32.xlu0 %v1316, 64
    %v1318 = vpop.permute.xlu0 %1317
    %v1320 = vsel %vm165, %v1313, %v1318
    %v1322 = vrot.slane %v1320, 4
    %v1323 = vsel %vm304, %v1322, 0
    %1325 = vmatprep.subr.mxu0 0.0
    %1326 = vmatpush1.msra.mxu0 %v54
    %1327 = vmatprep.subr.mxu0 0.0
    %1328 = vmatpush1.msra.mxu0 %v55
    %1329 = vmatprep.subr.mxu0 0.0
    %1330 = vmatpush1.msra.mxu0 %v56
    %1331 = vmatprep.subr.mxu0 0.0
    %1332 = vmatpush1.msra.mxu0 %v57
    %1333 = vmatprep.subr.mxu0 0.0
    %1334 = vmatpush1.msra.mxu0 %v58
    %1335 = vmatprep.subr.mxu0 0.0
    %1336 = vmatpush1.msra.mxu0 %v59
    %1337 = vmatprep.subr.mxu0 0.0
    %1338 = vmatpush1.msra.mxu0 %v60
    %1339 = vmatprep.subr.mxu0 0.0
    %1340 = vmatpush1.msra.mxu0 %v61
    %1341 = vmatprep.subr.mxu0 0.0
    %1342 = vmatpush1.msra.mxu0 0.0
    %1343 = vmatprep.subr.mxu0 0.0
    %1344 = vmatpush1.msra.mxu0 0.0
    %1345 = vmatprep.subr.mxu0 0.0
    %1346 = vmatpush1.msra.mxu0 0.0
    %1347 = vmatprep.subr.mxu0 0.0
    %1348 = vmatpush1.msra.mxu0 0.0
    %1349 = vmatprep.subr.mxu0 0.0
    %1350 = vmatpush1.msra.mxu0 0.0
    %1351 = vmatprep.subr.mxu0 0.0
    %1352 = vmatpush1.msra.mxu0 0.0
    %1353 = vmatprep.subr.mxu0 0.0
    %1354 = vmatpush1.msra.mxu0 0.0
    %1355 = vmatprep.subr.mxu0 0.0
    %1356 = vmatpush1.msra.mxu0 0.0
    %1357 = vmatprep.subr.mxu0 0.0
    %1358 = vmatpush1.msra.mxu0 0.0
    %1359 = vmatprep.subr.mxu0 0.0
    %1360 = vmatpush1.msra.mxu0 0.0
    %1361 = vmatprep.subr.mxu0 0.0
    %1362 = vmatpush1.msra.mxu0 0.0
    %1363 = vmatprep.subr.mxu0 0.0
    %1364 = vmatpush1.msra.mxu0 0.0
    %1365 = vmatprep.subr.mxu0 0.0
    %1366 = vmatpush1.msra.mxu0 0.0
    %1367 = vmatprep.subr.mxu0 0.0
    %1368 = vmatpush1.msra.mxu0 0.0
    %1369 = vmatprep.subr.mxu0 0.0
    %1370 = vmatpush1.msra.mxu0 0.0
    %1371 = vmatprep.subr.mxu0 0.0
    %1372 = vmatpush1.msra.mxu0 0.0
    %1373 = vmatprep.subr.mxu0 0.0
    %1374 = vmatpush1.msra.mxu0 0.0
    %1375 = vmatprep.subr.mxu0 0.0
    %1376 = vmatpush1.msra.mxu0 0.0
    %1377 = vmatprep.subr.mxu0 0.0
    %1378 = vmatpush1.msra.mxu0 0.0
    %1379 = vmatprep.subr.mxu0 0.0
    %1380 = vmatpush1.msra.mxu0 0.0
    %1381 = vmatprep.subr.mxu0 0.0
    %1382 = vmatpush1.msra.mxu0 0.0
    %1383 = vmatprep.subr.mxu0 0.0
    %1384 = vmatpush1.msra.mxu0 0.0
    %1385 = vmatprep.subr.mxu0 0.0
    %1386 = vmatpush1.msra.mxu0 0.0
    %1387 = vmatprep.subr.mxu0 0.0
    %1388 = vmatpush1.msra.mxu0 0.0
    %1389 = vmatprep.mubr.f32.mxu0 0.0
    %1390 = vmatmul.mubr.f32.gmra.mrb[0].mxu0 %v1323
    %v1391 = vpop.f32.mrb[0].mxu0
    %v1392 = vadd.f32 %v67, %v1391
    %v1393 = vpop.f32.mrb[0].mxu0
    %1394 = vdwg.mxu0
    %v1395 = vxor.u32 %v1392, 2147483648
    %v1396 = vmul.f32 %v1395, 1.442695
    %v1397 = vpow.pop %v1396
    %v1398 = vadd.f32 %v1397, 1.0
    %v1399 = vrcp.pop %v1398
    %v1400 = vmul.f32 1.0, %v1399
    %v1401 = vtanh.pop %v1392
    %v1402 = vmul.f32 %v1400, %v1157
    %1404 = vrot.lane.b32.xlu0 %v1401, 64
    %v1405 = vpop.permute.xlu0 %1404
    %v1407 = vmul.f32 %v1400, %v1405
    %1409 = vrot.lane.b32.xlu0 %v1407, 32
    %v1410 = vpop.permute.xlu0 %1409
    %v1412 = vadd.f32 %v1402, %v1410
    %v1413 = vtanh.pop %v1412
    %1415 = vrot.lane.b32.xlu0 %v1413, 64
    %v1416 = vpop.permute.xlu0 %1415
    %v1418 = vmul.f32 %v1400, %v1416
    %v1419 = vmax.f32 %v1418, 0.0
    %v1422 = vrot.slane %v1303, 4
    %v1423 = vrot.slane %v1304, 3
    %v1424 = vsel %vm298, %v1423, %v1422
    %1425 = vrot.lane.b32.xlu0 %v1424, 32
    %v1426 = vpop.permute.xlu0 %1425
    %v1427 = vsel %vm165, %v1426, 0
    %1429 = vmatprep.subr.mxu0 0.0
    %1430 = vmatpush1.msra.mxu0 %v50
    %1431 = vmatprep.subr.mxu0 0.0
    %1432 = vmatpush1.msra.mxu0 %v51
    %1433 = vmatprep.subr.mxu0 0.0
    %1434 = vmatpush1.msra.mxu0 %v52
    %1435 = vmatprep.subr.mxu0 0.0
    %1436 = vmatpush1.msra.mxu0 %v53
    %1437 = vmatprep.subr.mxu0 0.0
    %1438 = vmatpush1.msra.mxu0 0.0
    %1439 = vmatprep.subr.mxu0 0.0
    %1440 = vmatpush1.msra.mxu0 0.0
    %1441 = vmatprep.subr.mxu0 0.0
    %1442 = vmatpush1.msra.mxu0 0.0
    %1443 = vmatprep.subr.mxu0 0.0
    %1444 = vmatpush1.msra.mxu0 0.0
    %1445 = vmatprep.subr.mxu0 0.0
    %1446 = vmatpush1.msra.mxu0 0.0
    %1447 = vmatprep.subr.mxu0 0.0
    %1448 = vmatpush1.msra.mxu0 0.0
    %1449 = vmatprep.subr.mxu0 0.0
    %1450 = vmatpush1.msra.mxu0 0.0
    %1451 = vmatprep.subr.mxu0 0.0
    %1452 = vmatpush1.msra.mxu0 0.0
    %1453 = vmatprep.subr.mxu0 0.0
    %1454 = vmatpush1.msra.mxu0 0.0
    %1455 = vmatprep.subr.mxu0 0.0
    %1456 = vmatpush1.msra.mxu0 0.0
    %1457 = vmatprep.subr.mxu0 0.0
    %1458 = vmatpush1.msra.mxu0 0.0
    %1459 = vmatprep.subr.mxu0 0.0
    %1460 = vmatpush1.msra.mxu0 0.0
    %1461 = vmatprep.subr.mxu0 0.0
    %1462 = vmatpush1.msra.mxu0 0.0
    %1463 = vmatprep.subr.mxu0 0.0
    %1464 = vmatpush1.msra.mxu0 0.0
    %1465 = vmatprep.subr.mxu0 0.0
    %1466 = vmatpush1.msra.mxu0 0.0
    %1467 = vmatprep.subr.mxu0 0.0
    %1468 = vmatpush1.msra.mxu0 0.0
    %1469 = vmatprep.subr.mxu0 0.0
    %1470 = vmatpush1.msra.mxu0 0.0
    %1471 = vmatprep.subr.mxu0 0.0
    %1472 = vmatpush1.msra.mxu0 0.0
    %1473 = vmatprep.subr.mxu0 0.0
    %1474 = vmatpush1.msra.mxu0 0.0
    %1475 = vmatprep.subr.mxu0 0.0
    %1476 = vmatpush1.msra.mxu0 0.0
    %1477 = vmatprep.subr.mxu0 0.0
    %1478 = vmatpush1.msra.mxu0 0.0
    %1479 = vmatprep.subr.mxu0 0.0
    %1480 = vmatpush1.msra.mxu0 0.0
    %1481 = vmatprep.subr.mxu0 0.0
    %1482 = vmatpush1.msra.mxu0 0.0
    %1483 = vmatprep.subr.mxu0 0.0
    %1484 = vmatpush1.msra.mxu0 0.0
    %1485 = vmatprep.subr.mxu0 0.0
    %1486 = vmatpush1.msra.mxu0 0.0
    %1487 = vmatprep.subr.mxu0 0.0
    %1488 = vmatpush1.msra.mxu0 0.0
    %1489 = vmatprep.subr.mxu0 0.0
    %1490 = vmatpush1.msra.mxu0 0.0
    %1491 = vmatprep.subr.mxu0 0.0
    %1492 = vmatpush1.msra.mxu0 0.0
    %1493 = vmatprep.mubr.f32.mxu0 0.0
    %1494 = vmatmul.mubr.f32.gmra.mrb[0].mxu0 %v1427
    %v1495 = vpop.f32.mrb[0].mxu0
    %v1496 = vadd.f32 0.0, %v1495
    %v1497 = vpop.f32.mrb[0].mxu0
    %1498 = vdwg.mxu0
    %v1500 = vrot.slane %v1496, 3
    %v1501 = vrot.slane %v1496, 4
    %v1504 = vadd.f32 %v157, %v1500
    %v1505 = vadd.f32 %v162, %v1501
    %v1506 = vxor.u32 %v1504, 2147483648
    %v1507 = vxor.u32 %v1505, 2147483648
    %v1508 = vmul.f32 %v1506, 1.442695
    %v1509 = vpow.pop %v1508
    %v1510 = vmul.f32 %v1507, 1.442695
    %v1511 = vpow.pop %v1510
    %v1512 = vadd.f32 %v1509, 1.0
    %v1513 = vadd.f32 %v1511, 1.0
    %v1514 = vrcp.pop %v1512
    %v1515 = vmul.f32 1.0, %v1514
    %v1516 = vrcp.pop %v1513
    %v1517 = vmul.f32 1.0, %v1516
    %v1518 = vtanh.pop %v1504
    %v1519 = vtanh.pop %v1505
    %v1522 = vrot.slane %v1291, 7
    %v1523 = vrot.slane %v1292, 7
    %v1526 = vmul.f32 %v1515, %v1522
    %v1527 = vmul.f32 %v1517, %v1523
    %1530 = vrot.lane.b32.xlu0 %v1518, 64
    %v1531 = vpop.permute.xlu0 %1530
    %1532 = vrot.lane.b32.xlu0 %v1519, 64
    %v1533 = vpop.permute.xlu0 %1532
    %v1536 = vmul.f32 %v1515, %v1531
    %v1537 = vmul.f32 %v1517, %v1533
    %1540 = vrot.lane.b32.xlu0 %v1536, 32
    %v1541 = vpop.permute.xlu0 %1540
    %1542 = vrot.lane.b32.xlu0 %v1537, 32
    %v1543 = vpop.permute.xlu0 %1542
    %v1546 = vadd.f32 %v1526, %v1541
    %v1547 = vadd.f32 %v1527, %v1543
    %v1548 = vtanh.pop %v1546
    %v1549 = vtanh.pop %v1547
    %1552 = vrot.lane.b32.xlu0 %v1548, 64
    %v1553 = vpop.permute.xlu0 %1552
    %1554 = vrot.lane.b32.xlu0 %v1549, 64
    %v1555 = vpop.permute.xlu0 %1554
    %v1558 = vmul.f32 %v1515, %v1553
    %v1559 = vmul.f32 %v1517, %v1555
    %v1560 = vmax.f32 %v1558, 0.0
    %v1561 = vmax.f32 %v1559, 0.0
    %v1564 = vrot.slane %v1561, 7
    %vm1565 = vcmask 1046534
    %v1566 = vsel %vm1565, %v1564, %v1560
    %1567 = vrot.lane.b32.xlu0 %v1566, 32
    %v1568 = vpop.permute.xlu0 %1567
    %v1571 = vrot.slane %v1418, 3
    %1572 = vrot.lane.b32.xlu0 %v1571, 64
    %v1573 = vpop.permute.xlu0 %1572
    %v1575 = vsel %vm165, %v1568, %v1573
    %v1577 = vrot.slane %v1575, 5
    %v1578 = vsel %vm304, %v1577, 0
    %1580 = vmatprep.subr.mxu0 0.0
    %1581 = vmatpush1.msra.mxu0 %v54
    %1582 = vmatprep.subr.mxu0 0.0
    %1583 = vmatpush1.msra.mxu0 %v55
    %1584 = vmatprep.subr.mxu0 0.0
    %1585 = vmatpush1.msra.mxu0 %v56
    %1586 = vmatprep.subr.mxu0 0.0
    %1587 = vmatpush1.msra.mxu0 %v57
    %1588 = vmatprep.subr.mxu0 0.0
    %1589 = vmatpush1.msra.mxu0 %v58
    %1590 = vmatprep.subr.mxu0 0.0
    %1591 = vmatpush1.msra.mxu0 %v59
    %1592 = vmatprep.subr.mxu0 0.0
    %1593 = vmatpush1.msra.mxu0 %v60
    %1594 = vmatprep.subr.mxu0 0.0
    %1595 = vmatpush1.msra.mxu0 %v61
    %1596 = vmatprep.subr.mxu0 0.0
    %1597 = vmatpush1.msra.mxu0 0.0
    %1598 = vmatprep.subr.mxu0 0.0
    %1599 = vmatpush1.msra.mxu0 0.0
    %1600 = vmatprep.subr.mxu0 0.0
    %1601 = vmatpush1.msra.mxu0 0.0
    %1602 = vmatprep.subr.mxu0 0.0
    %1603 = vmatpush1.msra.mxu0 0.0
    %1604 = vmatprep.subr.mxu0 0.0
    %1605 = vmatpush1.msra.mxu0 0.0
    %1606 = vmatprep.subr.mxu0 0.0
    %1607 = vmatpush1.msra.mxu0 0.0
    %1608 = vmatprep.subr.mxu0 0.0
    %1609 = vmatpush1.msra.mxu0 0.0
    %1610 = vmatprep.subr.mxu0 0.0
    %1611 = vmatpush1.msra.mxu0 0.0
    %1612 = vmatprep.subr.mxu0 0.0
    %1613 = vmatpush1.msra.mxu0 0.0
    %1614 = vmatprep.subr.mxu0 0.0
    %1615 = vmatpush1.msra.mxu0 0.0
    %1616 = vmatprep.subr.mxu0 0.0
    %1617 = vmatpush1.msra.mxu0 0.0
    %1618 = vmatprep.subr.mxu0 0.0
    %1619 = vmatpush1.msra.mxu0 0.0
    %1620 = vmatprep.subr.mxu0 0.0
    %1621 = vmatpush1.msra.mxu0 0.0
    %1622 = vmatprep.subr.mxu0 0.0
    %1623 = vmatpush1.msra.mxu0 0.0
    %1624 = vmatprep.subr.mxu0 0.0
    %1625 = vmatpush1.msra.mxu0 0.0
    %1626 = vmatprep.subr.mxu0 0.0
    %1627 = vmatpush1.msra.mxu0 0.0
    %1628 = vmatprep.subr.mxu0 0.0
    %1629 = vmatpush1.msra.mxu0 0.0
    %1630 = vmatprep.subr.mxu0 0.0
    %1631 = vmatpush1.msra.mxu0 0.0
    %1632 = vmatprep.subr.mxu0 0.0
    %1633 = vmatpush1.msra.mxu0 0.0
    %1634 = vmatprep.subr.mxu0 0.0
    %1635 = vmatpush1.msra.mxu0 0.0
    %1636 = vmatprep.subr.mxu0 0.0
    %1637 = vmatpush1.msra.mxu0 0.0
    %1638 = vmatprep.subr.mxu0 0.0
    %1639 = vmatpush1.msra.mxu0 0.0
    %1640 = vmatprep.subr.mxu0 0.0
    %1641 = vmatpush1.msra.mxu0 0.0
    %1642 = vmatprep.subr.mxu0 0.0
    %1643 = vmatpush1.msra.mxu0 0.0
    %1644 = vmatprep.mubr.f32.mxu0 0.0
    %1645 = vmatmul.mubr.f32.gmra.mrb[0].mxu0 %v1578
    %v1646 = vpop.f32.mrb[0].mxu0
    %v1647 = vadd.f32 %v67, %v1646
    %v1648 = vpop.f32.mrb[0].mxu0
    %1649 = vdwg.mxu0
    %v1650 = vxor.u32 %v1647, 2147483648
    %v1651 = vmul.f32 %v1650, 1.442695
    %v1652 = vpow.pop %v1651
    %v1653 = vadd.f32 %v1652, 1.0
    %v1654 = vrcp.pop %v1653
    %v1655 = vmul.f32 1.0, %v1654
    %v1656 = vtanh.pop %v1647
    %v1657 = vmul.f32 %v1655, %v1412
    %1659 = vrot.lane.b32.xlu0 %v1656, 64
    %v1660 = vpop.permute.xlu0 %1659
    %v1662 = vmul.f32 %v1655, %v1660
    %1664 = vrot.lane.b32.xlu0 %v1662, 32
    %v1665 = vpop.permute.xlu0 %1664
    %v1667 = vadd.f32 %v1657, %v1665
    %v1668 = vtanh.pop %v1667
    %1670 = vrot.lane.b32.xlu0 %v1668, 64
    %v1671 = vpop.permute.xlu0 %1670
    %v1673 = vmul.f32 %v1655, %v1671
    %v1674 = vmax.f32 %v1673, 0.0
    %v1677 = vrot.slane %v1558, 5
    %v1678 = vrot.slane %v1559, 4
    %v1679 = vsel %vm298, %v1678, %v1677
    %1680 = vrot.lane.b32.xlu0 %v1679, 32
    %v1681 = vpop.permute.xlu0 %1680
    %v1682 = vsel %vm165, %v1681, 0
    %1684 = vmatprep.subr.mxu0 0.0
    %1685 = vmatpush1.msra.mxu0 %v50
    %1686 = vmatprep.subr.mxu0 0.0
    %1687 = vmatpush1.msra.mxu0 %v51
    %1688 = vmatprep.subr.mxu0 0.0
    %1689 = vmatpush1.msra.mxu0 %v52
    %1690 = vmatprep.subr.mxu0 0.0
    %1691 = vmatpush1.msra.mxu0 %v53
    %1692 = vmatprep.subr.mxu0 0.0
    %1693 = vmatpush1.msra.mxu0 0.0
    %1694 = vmatprep.subr.mxu0 0.0
    %1695 = vmatpush1.msra.mxu0 0.0
    %1696 = vmatprep.subr.mxu0 0.0
    %1697 = vmatpush1.msra.mxu0 0.0
    %1698 = vmatprep.subr.mxu0 0.0
    %1699 = vmatpush1.msra.mxu0 0.0
    %1700 = vmatprep.subr.mxu0 0.0
    %1701 = vmatpush1.msra.mxu0 0.0
    %1702 = vmatprep.subr.mxu0 0.0
    %1703 = vmatpush1.msra.mxu0 0.0
    %1704 = vmatprep.subr.mxu0 0.0
    %1705 = vmatpush1.msra.mxu0 0.0
    %1706 = vmatprep.subr.mxu0 0.0
    %1707 = vmatpush1.msra.mxu0 0.0
    %1708 = vmatprep.subr.mxu0 0.0
    %1709 = vmatpush1.msra.mxu0 0.0
    %1710 = vmatprep.subr.mxu0 0.0
    %1711 = vmatpush1.msra.mxu0 0.0
    %1712 = vmatprep.subr.mxu0 0.0
    %1713 = vmatpush1.msra.mxu0 0.0
    %1714 = vmatprep.subr.mxu0 0.0
    %1715 = vmatpush1.msra.mxu0 0.0
    %1716 = vmatprep.subr.mxu0 0.0
    %1717 = vmatpush1.msra.mxu0 0.0
    %1718 = vmatprep.subr.mxu0 0.0
    %1719 = vmatpush1.msra.mxu0 0.0
    %1720 = vmatprep.subr.mxu0 0.0
    %1721 = vmatpush1.msra.mxu0 0.0
    %1722 = vmatprep.subr.mxu0 0.0
    %1723 = vmatpush1.msra.mxu0 0.0
    %1724 = vmatprep.subr.mxu0 0.0
    %1725 = vmatpush1.msra.mxu0 0.0
    %1726 = vmatprep.subr.mxu0 0.0
    %1727 = vmatpush1.msra.mxu0 0.0
    %1728 = vmatprep.subr.mxu0 0.0
    %1729 = vmatpush1.msra.mxu0 0.0
    %1730 = vmatprep.subr.mxu0 0.0
    %1731 = vmatpush1.msra.mxu0 0.0
    %1732 = vmatprep.subr.mxu0 0.0
    %1733 = vmatpush1.msra.mxu0 0.0
    %1734 = vmatprep.subr.mxu0 0.0
    %1735 = vmatpush1.msra.mxu0 0.0
    %1736 = vmatprep.subr.mxu0 0.0
    %1737 = vmatpush1.msra.mxu0 0.0
    %1738 = vmatprep.subr.mxu0 0.0
    %1739 = vmatpush1.msra.mxu0 0.0
    %1740 = vmatprep.subr.mxu0 0.0
    %1741 = vmatpush1.msra.mxu0 0.0
    %1742 = vmatprep.subr.mxu0 0.0
    %1743 = vmatpush1.msra.mxu0 0.0
    %1744 = vmatprep.subr.mxu0 0.0
    %1745 = vmatpush1.msra.mxu0 0.0
    %1746 = vmatprep.subr.mxu0 0.0
    %1747 = vmatpush1.msra.mxu0 0.0
    %1748 = vmatprep.mubr.f32.mxu0 0.0
    %1749 = vmatmul.mubr.f32.gmra.mrb[0].mxu0 %v1682
    %v1750 = vpop.f32.mrb[0].mxu0
    %v1751 = vadd.f32 0.0, %v1750
    %v1752 = vpop.f32.mrb[0].mxu0
    %1753 = vdwg.mxu0
    %v1755 = vrot.slane %v1751, 2
    %v1756 = vrot.slane %v1751, 3
    %v1759 = vadd.f32 %v157, %v1755
    %v1760 = vadd.f32 %v162, %v1756
    %v1761 = vxor.u32 %v1759, 2147483648
    %v1762 = vxor.u32 %v1760, 2147483648
    %v1763 = vmul.f32 %v1761, 1.442695
    %v1764 = vpow.pop %v1763
    %v1765 = vmul.f32 %v1762, 1.442695
    %v1766 = vpow.pop %v1765
    %v1767 = vadd.f32 %v1764, 1.0
    %v1768 = vadd.f32 %v1766, 1.0
    %v1769 = vrcp.pop %v1767
    %v1770 = vmul.f32 1.0, %v1769
    %v1771 = vrcp.pop %v1768
    %v1772 = vmul.f32 1.0, %v1771
    %v1773 = vtanh.pop %v1759
    %v1774 = vtanh.pop %v1760
    %v1777 = vrot.slane %v1546, 7
    %v1778 = vrot.slane %v1547, 7
    %v1781 = vmul.f32 %v1770, %v1777
    %v1782 = vmul.f32 %v1772, %v1778
    %1785 = vrot.lane.b32.xlu0 %v1773, 64
    %v1786 = vpop.permute.xlu0 %1785
    %1787 = vrot.lane.b32.xlu0 %v1774, 64
    %v1788 = vpop.permute.xlu0 %1787
    %v1791 = vmul.f32 %v1770, %v1786
    %v1792 = vmul.f32 %v1772, %v1788
    %1795 = vrot.lane.b32.xlu0 %v1791, 32
    %v1796 = vpop.permute.xlu0 %1795
    %1797 = vrot.lane.b32.xlu0 %v1792, 32
    %v1798 = vpop.permute.xlu0 %1797
    %v1801 = vadd.f32 %v1781, %v1796
    %v1802 = vadd.f32 %v1782, %v1798
    %v1803 = vtanh.pop %v1801
    %v1804 = vtanh.pop %v1802
    %1807 = vrot.lane.b32.xlu0 %v1803, 64
    %v1808 = vpop.permute.xlu0 %1807
    %1809 = vrot.lane.b32.xlu0 %v1804, 64
    %v1810 = vpop.permute.xlu0 %1809
    %v1813 = vmul.f32 %v1770, %v1808
    %v1814 = vmul.f32 %v1772, %v1810
    %v1815 = vmax.f32 %v1813, 0.0
    %v1816 = vmax.f32 %v1814, 0.0
    %v1819 = vrot.slane %v1816, 7
    %vm1820 = vcmask 1047559
    %v1821 = vsel %vm1820, %v1819, %v1815
    %1822 = vrot.lane.b32.xlu0 %v1821, 32
    %v1823 = vpop.permute.xlu0 %1822
    %v1826 = vrot.slane %v1673, 2
    %1827 = vrot.lane.b32.xlu0 %v1826, 64
    %v1828 = vpop.permute.xlu0 %1827
    %v1830 = vsel %vm165, %v1823, %v1828
    %v1832 = vrot.slane %v1830, 6
    %v1833 = vsel %vm304, %v1832, 0
    %1835 = vmatprep.subr.mxu0 0.0
    %1836 = vmatpush1.msra.mxu0 %v54
    %1837 = vmatprep.subr.mxu0 0.0
    %1838 = vmatpush1.msra.mxu0 %v55
    %1839 = vmatprep.subr.mxu0 0.0
    %1840 = vmatpush1.msra.mxu0 %v56
    %1841 = vmatprep.subr.mxu0 0.0
    %1842 = vmatpush1.msra.mxu0 %v57
    %1843 = vmatprep.subr.mxu0 0.0
    %1844 = vmatpush1.msra.mxu0 %v58
    %1845 = vmatprep.subr.mxu0 0.0
    %1846 = vmatpush1.msra.mxu0 %v59
    %1847 = vmatprep.subr.mxu0 0.0
    %1848 = vmatpush1.msra.mxu0 %v60
    %1849 = vmatprep.subr.mxu0 0.0
    %1850 = vmatpush1.msra.mxu0 %v61
    %1851 = vmatprep.subr.mxu0 0.0
    %1852 = vmatpush1.msra.mxu0 0.0
    %1853 = vmatprep.subr.mxu0 0.0
    %1854 = vmatpush1.msra.mxu0 0.0
    %1855 = vmatprep.subr.mxu0 0.0
    %1856 = vmatpush1.msra.mxu0 0.0
    %1857 = vmatprep.subr.mxu0 0.0
    %1858 = vmatpush1.msra.mxu0 0.0
    %1859 = vmatprep.subr.mxu0 0.0
    %1860 = vmatpush1.msra.mxu0 0.0
    %1861 = vmatprep.subr.mxu0 0.0
    %1862 = vmatpush1.msra.mxu0 0.0
    %1863 = vmatprep.subr.mxu0 0.0
    %1864 = vmatpush1.msra.mxu0 0.0
    %1865 = vmatprep.subr.mxu0 0.0
    %1866 = vmatpush1.msra.mxu0 0.0
    %1867 = vmatprep.subr.mxu0 0.0
    %1868 = vmatpush1.msra.mxu0 0.0
    %1869 = vmatprep.subr.mxu0 0.0
    %1870 = vmatpush1.msra.mxu0 0.0
    %1871 = vmatprep.subr.mxu0 0.0
    %1872 = vmatpush1.msra.mxu0 0.0
    %1873 = vmatprep.subr.mxu0 0.0
    %1874 = vmatpush1.msra.mxu0 0.0
    %1875 = vmatprep.subr.mxu0 0.0
    %1876 = vmatpush1.msra.mxu0 0.0
    %1877 = vmatprep.subr.mxu0 0.0
    %1878 = vmatpush1.msra.mxu0 0.0
    %1879 = vmatprep.subr.mxu0 0.0
    %1880 = vmatpush1.msra.mxu0 0.0
    %1881 = vmatprep.subr.mxu0 0.0
    %1882 = vmatpush1.msra.mxu0 0.0
    %1883 = vmatprep.subr.mxu0 0.0
    %1884 = vmatpush1.msra.mxu0 0.0
    %1885 = vmatprep.subr.mxu0 0.0
    %1886 = vmatpush1.msra.mxu0 0.0
    %1887 = vmatprep.subr.mxu0 0.0
    %1888 = vmatpush1.msra.mxu0 0.0
    %1889 = vmatprep.subr.mxu0 0.0
    %1890 = vmatpush1.msra.mxu0 0.0
    %1891 = vmatprep.subr.mxu0 0.0
    %1892 = vmatpush1.msra.mxu0 0.0
    %1893 = vmatprep.subr.mxu0 0.0
    %1894 = vmatpush1.msra.mxu0 0.0
    %1895 = vmatprep.subr.mxu0 0.0
    %1896 = vmatpush1.msra.mxu0 0.0
    %1897 = vmatprep.subr.mxu0 0.0
    %1898 = vmatpush1.msra.mxu0 0.0
    %1899 = vmatprep.mubr.f32.mxu0 0.0
    %1900 = vmatmul.mubr.f32.gmra.mrb[0].mxu0 %v1833
    %v1901 = vpop.f32.mrb[0].mxu0
    %v1902 = vadd.f32 %v67, %v1901
    %v1903 = vpop.f32.mrb[0].mxu0
    %1904 = vdwg.mxu0
    %v1905 = vxor.u32 %v1902, 2147483648
    %v1906 = vmul.f32 %v1905, 1.442695
    %v1907 = vpow.pop %v1906
    %v1908 = vadd.f32 %v1907, 1.0
    %v1909 = vrcp.pop %v1908
    %v1910 = vmul.f32 1.0, %v1909
    %v1911 = vtanh.pop %v1902
    %v1912 = vmul.f32 %v1910, %v1667
    %1914 = vrot.lane.b32.xlu0 %v1911, 64
    %v1915 = vpop.permute.xlu0 %1914
    %v1917 = vmul.f32 %v1910, %v1915
    %1919 = vrot.lane.b32.xlu0 %v1917, 32
    %v1920 = vpop.permute.xlu0 %1919
    %v1922 = vadd.f32 %v1912, %v1920
    %v1923 = vtanh.pop %v1922
    %1925 = vrot.lane.b32.xlu0 %v1923, 64
    %v1926 = vpop.permute.xlu0 %1925
    %v1928 = vmul.f32 %v1910, %v1926
    %v1929 = vmax.f32 %v1928, 0.0
    %v1932 = vrot.slane %v1813, 6
    %v1933 = vrot.slane %v1814, 5
    %v1934 = vsel %vm298, %v1933, %v1932
    %1935 = vrot.lane.b32.xlu0 %v1934, 32
    %v1936 = vpop.permute.xlu0 %1935
    %v1937 = vsel %vm165, %v1936, 0
    %1939 = vmatprep.subr.mxu0 0.0
    %1940 = vmatpush1.msra.mxu0 %v50
    %1941 = vmatprep.subr.mxu0 0.0
    %1942 = vmatpush1.msra.mxu0 %v51
    %1943 = vmatprep.subr.mxu0 0.0
    %1944 = vmatpush1.msra.mxu0 %v52
    %1945 = vmatprep.subr.mxu0 0.0
    %1946 = vmatpush1.msra.mxu0 %v53
    %1947 = vmatprep.subr.mxu0 0.0
    %1948 = vmatpush1.msra.mxu0 0.0
    %1949 = vmatprep.subr.mxu0 0.0
    %1950 = vmatpush1.msra.mxu0 0.0
    %1951 = vmatprep.subr.mxu0 0.0
    %1952 = vmatpush1.msra.mxu0 0.0
    %1953 = vmatprep.subr.mxu0 0.0
    %1954 = vmatpush1.msra.mxu0 0.0
    %1955 = vmatprep.subr.mxu0 0.0
    %1956 = vmatpush1.msra.mxu0 0.0
    %1957 = vmatprep.subr.mxu0 0.0
    %1958 = vmatpush1.msra.mxu0 0.0
    %1959 = vmatprep.subr.mxu0 0.0
    %1960 = vmatpush1.msra.mxu0 0.0
    %1961 = vmatprep.subr.mxu0 0.0
    %1962 = vmatpush1.msra.mxu0 0.0
    %1963 = vmatprep.subr.mxu0 0.0
    %1964 = vmatpush1.msra.mxu0 0.0
    %1965 = vmatprep.subr.mxu0 0.0
    %1966 = vmatpush1.msra.mxu0 0.0
    %1967 = vmatprep.subr.mxu0 0.0
    %1968 = vmatpush1.msra.mxu0 0.0
    %1969 = vmatprep.subr.mxu0 0.0
    %1970 = vmatpush1.msra.mxu0 0.0
    %1971 = vmatprep.subr.mxu0 0.0
    %1972 = vmatpush1.msra.mxu0 0.0
    %1973 = vmatprep.subr.mxu0 0.0
    %1974 = vmatpush1.msra.mxu0 0.0
    %1975 = vmatprep.subr.mxu0 0.0
    %1976 = vmatpush1.msra.mxu0 0.0
    %1977 = vmatprep.subr.mxu0 0.0
    %1978 = vmatpush1.msra.mxu0 0.0
    %1979 = vmatprep.subr.mxu0 0.0
    %1980 = vmatpush1.msra.mxu0 0.0
    %1981 = vmatprep.subr.mxu0 0.0
    %1982 = vmatpush1.msra.mxu0 0.0
    %1983 = vmatprep.subr.mxu0 0.0
    %1984 = vmatpush1.msra.mxu0 0.0
    %1985 = vmatprep.subr.mxu0 0.0
    %1986 = vmatpush1.msra.mxu0 0.0
    %1987 = vmatprep.subr.mxu0 0.0
    %1988 = vmatpush1.msra.mxu0 0.0
    %1989 = vmatprep.subr.mxu0 0.0
    %1990 = vmatpush1.msra.mxu0 0.0
    %1991 = vmatprep.subr.mxu0 0.0
    %1992 = vmatpush1.msra.mxu0 0.0
    %1993 = vmatprep.subr.mxu0 0.0
    %1994 = vmatpush1.msra.mxu0 0.0
    %1995 = vmatprep.subr.mxu0 0.0
    %1996 = vmatpush1.msra.mxu0 0.0
    %1997 = vmatprep.subr.mxu0 0.0
    %1998 = vmatpush1.msra.mxu0 0.0
    %1999 = vmatprep.subr.mxu0 0.0
    %2000 = vmatpush1.msra.mxu0 0.0
    %2001 = vmatprep.subr.mxu0 0.0
    %2002 = vmatpush1.msra.mxu0 0.0
    %2003 = vmatprep.mubr.f32.mxu0 0.0
    %2004 = vmatmul.mubr.f32.gmra.mrb[0].mxu0 %v1937
    %v2005 = vpop.f32.mrb[0].mxu0
    %v2006 = vadd.f32 0.0, %v2005
    %v2007 = vpop.f32.mrb[0].mxu0
    %2008 = vdwg.mxu0
    %v2010 = vrot.slane %v2006, 1
    %v2011 = vrot.slane %v2006, 2
    %v2014 = vadd.f32 %v157, %v2010
    %v2015 = vadd.f32 %v162, %v2011
    %v2016 = vxor.u32 %v2014, 2147483648
    %v2017 = vxor.u32 %v2015, 2147483648
    %v2018 = vmul.f32 %v2016, 1.442695
    %v2019 = vpow.pop %v2018
    %v2020 = vmul.f32 %v2017, 1.442695
    %v2021 = vpow.pop %v2020
    %v2022 = vadd.f32 %v2019, 1.0
    %v2023 = vadd.f32 %v2021, 1.0
    %v2024 = vrcp.pop %v2022
    %v2025 = vmul.f32 1.0, %v2024
    %v2026 = vrcp.pop %v2023
    %v2027 = vmul.f32 1.0, %v2026
    %v2028 = vtanh.pop %v2014
    %v2029 = vtanh.pop %v2015
    %v2032 = vrot.slane %v1801, 7
    %v2033 = vrot.slane %v1802, 7
    %v2036 = vmul.f32 %v2025, %v2032
    %v2037 = vmul.f32 %v2027, %v2033
    %2040 = vrot.lane.b32.xlu0 %v2028, 64
    %v2041 = vpop.permute.xlu0 %2040
    %2042 = vrot.lane.b32.xlu0 %v2029, 64
    %v2043 = vpop.permute.xlu0 %2042
    %v2046 = vmul.f32 %v2025, %v2041
    %v2047 = vmul.f32 %v2027, %v2043
    %2050 = vrot.lane.b32.xlu0 %v2046, 32
    %v2051 = vpop.permute.xlu0 %2050
    %2052 = vrot.lane.b32.xlu0 %v2047, 32
    %v2053 = vpop.permute.xlu0 %2052
    %v2056 = vadd.f32 %v2036, %v2051
    %v2057 = vadd.f32 %v2037, %v2053
    %v2058 = vtanh.pop %v2056
    %v2059 = vtanh.pop %v2057
    %2062 = vrot.lane.b32.xlu0 %v2058, 64
    %v2063 = vpop.permute.xlu0 %2062
    %2064 = vrot.lane.b32.xlu0 %v2059, 64
    %v2065 = vpop.permute.xlu0 %2064
    %v2068 = vmul.f32 %v2025, %v2063
    %v2069 = vmul.f32 %v2027, %v2065
    %v2070 = vmax.f32 %v2068, 0.0
    %v2071 = vmax.f32 %v2069, 0.0
    %v2074 = vrot.slane %v2071, 7
    %2075 = vrot.lane.b32.xlu0 %v2070, 32
    %v2076 = vpop.permute.xlu0 %2075
    %2077 = vrot.lane.b32.xlu0 %v2074, 32
    %v2078 = vpop.permute.xlu0 %2077
    %v2082 = vrot.slane %v1928, 1
    %2083 = vrot.lane.b32.xlu0 %v2082, 64
    %v2084 = vpop.permute.xlu0 %2083
    %v2086 = vsel %vm165, %v2076, %v2084
    %v2087 = vsel %vm165, %v2078, %v2084
    %vm2090 = vcmask 1040384
    %v2091 = vrot.slane %v2086, 7
    %v2092 = vrot.slane %v2087, 7
    %v2093 = vsel %vm2090, %v2091, %v2092
    %v2094 = vsel %vm304, %v2093, 0
    %2096 = vmatprep.subr.mxu0 0.0
    %2097 = vmatpush1.msra.mxu0 %v54
    %2098 = vmatprep.subr.mxu0 0.0
    %2099 = vmatpush1.msra.mxu0 %v55
    %2100 = vmatprep.subr.mxu0 0.0
    %2101 = vmatpush1.msra.mxu0 %v56
    %2102 = vmatprep.subr.mxu0 0.0
    %2103 = vmatpush1.msra.mxu0 %v57
    %2104 = vmatprep.subr.mxu0 0.0
    %2105 = vmatpush1.msra.mxu0 %v58
    %2106 = vmatprep.subr.mxu0 0.0
    %2107 = vmatpush1.msra.mxu0 %v59
    %2108 = vmatprep.subr.mxu0 0.0
    %2109 = vmatpush1.msra.mxu0 %v60
    %2110 = vmatprep.subr.mxu0 0.0
    %2111 = vmatpush1.msra.mxu0 %v61
    %2112 = vmatprep.subr.mxu0 0.0
    %2113 = vmatpush1.msra.mxu0 0.0
    %2114 = vmatprep.subr.mxu0 0.0
    %2115 = vmatpush1.msra.mxu0 0.0
    %2116 = vmatprep.subr.mxu0 0.0
    %2117 = vmatpush1.msra.mxu0 0.0
    %2118 = vmatprep.subr.mxu0 0.0
    %2119 = vmatpush1.msra.mxu0 0.0
    %2120 = vmatprep.subr.mxu0 0.0
    %2121 = vmatpush1.msra.mxu0 0.0
    %2122 = vmatprep.subr.mxu0 0.0
    %2123 = vmatpush1.msra.mxu0 0.0
    %2124 = vmatprep.subr.mxu0 0.0
    %2125 = vmatpush1.msra.mxu0 0.0
    %2126 = vmatprep.subr.mxu0 0.0
    %2127 = vmatpush1.msra.mxu0 0.0
    %2128 = vmatprep.subr.mxu0 0.0
    %2129 = vmatpush1.msra.mxu0 0.0
    %2130 = vmatprep.subr.mxu0 0.0
    %2131 = vmatpush1.msra.mxu0 0.0
    %2132 = vmatprep.subr.mxu0 0.0
    %2133 = vmatpush1.msra.mxu0 0.0
    %2134 = vmatprep.subr.mxu0 0.0
    %2135 = vmatpush1.msra.mxu0 0.0
    %2136 = vmatprep.subr.mxu0 0.0
    %2137 = vmatpush1.msra.mxu0 0.0
    %2138 = vmatprep.subr.mxu0 0.0
    %2139 = vmatpush1.msra.mxu0 0.0
    %2140 = vmatprep.subr.mxu0 0.0
    %2141 = vmatpush1.msra.mxu0 0.0
    %2142 = vmatprep.subr.mxu0 0.0
    %2143 = vmatpush1.msra.mxu0 0.0
    %2144 = vmatprep.subr.mxu0 0.0
    %2145 = vmatpush1.msra.mxu0 0.0
    %2146 = vmatprep.subr.mxu0 0.0
    %2147 = vmatpush1.msra.mxu0 0.0
    %2148 = vmatprep.subr.mxu0 0.0
    %2149 = vmatpush1.msra.mxu0 0.0
    %2150 = vmatprep.subr.mxu0 0.0
    %2151 = vmatpush1.msra.mxu0 0.0
    %2152 = vmatprep.subr.mxu0 0.0
    %2153 = vmatpush1.msra.mxu0 0.0
    %2154 = vmatprep.subr.mxu0 0.0
    %2155 = vmatpush1.msra.mxu0 0.0
    %2156 = vmatprep.subr.mxu0 0.0
    %2157 = vmatpush1.msra.mxu0 0.0
    %2158 = vmatprep.subr.mxu0 0.0
    %2159 = vmatpush1.msra.mxu0 0.0
    %2160 = vmatprep.mubr.f32.mxu0 0.0
    %2161 = vmatmul.mubr.f32.gmra.mrb[0].mxu0 %v2094
    %v2162 = vpop.f32.mrb[0].mxu0
    %v2163 = vadd.f32 %v67, %v2162
    %v2164 = vpop.f32.mrb[0].mxu0
    %2165 = vdwg.mxu0
    %v2166 = vxor.u32 %v2163, 2147483648
    %v2167 = vmul.f32 %v2166, 1.442695
    %v2168 = vpow.pop %v2167
    %v2169 = vadd.f32 %v2168, 1.0
    %v2170 = vrcp.pop %v2169
    %v2171 = vmul.f32 1.0, %v2170
    %v2172 = vtanh.pop %v2163
    %v2173 = vmul.f32 %v2171, %v1922
    %2175 = vrot.lane.b32.xlu0 %v2172, 64
    %v2176 = vpop.permute.xlu0 %2175
    %v2178 = vmul.f32 %v2171, %v2176
    %2180 = vrot.lane.b32.xlu0 %v2178, 32
    %v2181 = vpop.permute.xlu0 %2180
    %v2183 = vadd.f32 %v2173, %v2181
    %v2184 = vtanh.pop %v2183
    %2186 = vrot.lane.b32.xlu0 %v2184, 64
    %v2187 = vpop.permute.xlu0 %2186
    %v2189 = vmul.f32 %v2171, %v2187
    %v2190 = vmax.f32 %v2189, 0.0
    %2192 = vrot.lane.b32.xlu0 %v402, 32
    %v2193 = vpop.permute.xlu0 %2192
    %2196 = vrot.lane.b32.xlu0 %v655, 64
    %v2197 = vpop.permute.xlu0 %2196
    %2200 = vrot.lane.b32.xlu0 %v909, 96
    %v2201 = vpop.permute.xlu0 %2200
    %2204 = vrot.lane.b32.xlu0 %v1419, 32
    %v2205 = vpop.permute.xlu0 %2204
    %2208 = vrot.lane.b32.xlu0 %v1674, 64
    %v2209 = vpop.permute.xlu0 %2208
    %2212 = vrot.lane.b32.xlu0 %v1929, 96
    %v2213 = vpop.permute.xlu0 %2212
    %v2215 = vsel %vm165, %v2193, %v2197
    %v2216 = vsel %vm304, %v2215, %v2201
    %vm2217 = vcmask 785408
    %v2218 = vsel %vm2217, %v2216, %v1164
    %v2219 = vsel %vm165, %v2205, %v2209
    %v2220 = vsel %vm304, %v2219, %v2213
    %v2221 = vsel %vm2217, %v2220, %v2190
    %v2222 = vld [vmem:[#allocation2] sm:$0xff]
    %v2223 = vld [vmem:[#allocation2 + $0x8] sm:$0xff]
    %v2224 = vld [vmem:[#allocation2 + $0x10] sm:$0xff]
    %v2225 = vld [vmem:[#allocation2 + $0x18] sm:$0xff]
    %v2226 = vld [vmem:[#allocation2 + $0x20] sm:$0xff]
    %v2227 = vld [vmem:[#allocation2 + $0x28] sm:$0xff]
    %v2228 = vld [vmem:[#allocation2 + $0x30] sm:$0xff]
    %v2229 = vld [vmem:[#allocation2 + $0x38] sm:$0xff]
    %v2230 = vld [vmem:[#allocation2 + $0x40] sm:$0xff]
    %v2231 = vld [vmem:[#allocation2 + $0x48] sm:$0xff]
    %v2232 = vld [vmem:[#allocation2 + $0x50] sm:$0xff]
    %v2233 = vld [vmem:[#allocation2 + $0x58] sm:$0xff]
    %v2234 = vld [vmem:[#allocation2 + $0x60] sm:$0xff]
    %v2235 = vld [vmem:[#allocation2 + $0x68] sm:$0xff]
    %v2236 = vld [vmem:[#allocation2 + $0x70] sm:$0xff]
    %v2237 = vld [vmem:[#allocation2 + $0x78] sm:$0xff]
    %v2238 = vld [vmem:[#allocation2 + $0x80] sm:$0xff]
    %v2239 = vld [vmem:[#allocation2 + $0x88] sm:$0xff]
    %v2240 = vld [vmem:[#allocation2 + $0x90] sm:$0xff]
    %v2241 = vld [vmem:[#allocation2 + $0x98] sm:$0xff]
    %v2242 = vld [vmem:[#allocation2 + $0xa0] sm:$0xff]
    %v2243 = vld [vmem:[#allocation2 + $0xa8] sm:$0xff]
    %v2244 = vld [vmem:[#allocation2 + $0xb0] sm:$0xff]
    %v2245 = vld [vmem:[#allocation2 + $0xb8] sm:$0xff]
    %v2246 = vld [vmem:[#allocation2 + $0xc0] sm:$0xff]
    %v2247 = vld [vmem:[#allocation2 + $0xc8] sm:$0xff]
    %v2248 = vld [vmem:[#allocation2 + $0xd0] sm:$0xff]
    %v2249 = vld [vmem:[#allocation2 + $0xd8] sm:$0xff]
    %v2250 = vld [vmem:[#allocation2 + $0xe0] sm:$0xff]
    %v2251 = vld [vmem:[#allocation2 + $0xe8] sm:$0xff]
    %v2252 = vld [vmem:[#allocation2 + $0xf0] sm:$0xff]
    %v2253 = vld [vmem:[#allocation2 + $0xf8] sm:$0xff]
    %v2254 = vld [vmem:[%s7] sm:$0x1]
    %v2256 = vlaneseq
    %v2257 = vshrl.u32 %v2256, 7
    %v2258 = vsub.s32 0, %v2257
    %v2259 = vrot.slane %v2254, %v2258
    %2261 = vmatprep.subr.mxu0 0.0
    %2262 = vmatpush1.msra.mxu0 %v2222
    %2263 = vmatprep.subr.mxu0 0.0
    %2264 = vmatpush1.msra.mxu0 %v2223
    %2265 = vmatprep.subr.mxu0 0.0
    %2266 = vmatpush1.msra.mxu0 %v2224
    %2267 = vmatprep.subr.mxu0 0.0
    %2268 = vmatpush1.msra.mxu0 %v2225
    %2269 = vmatprep.subr.mxu0 0.0
    %2270 = vmatpush1.msra.mxu0 %v2226
    %2271 = vmatprep.subr.mxu0 0.0
    %2272 = vmatpush1.msra.mxu0 %v2227
    %2273 = vmatprep.subr.mxu0 0.0
    %2274 = vmatpush1.msra.mxu0 %v2228
    %2275 = vmatprep.subr.mxu0 0.0
    %2276 = vmatpush1.msra.mxu0 %v2229
    %2277 = vmatprep.subr.mxu0 0.0
    %2278 = vmatpush1.msra.mxu0 %v2230
    %2279 = vmatprep.subr.mxu0 0.0
    %2280 = vmatpush1.msra.mxu0 %v2231
    %2281 = vmatprep.subr.mxu0 0.0
    %2282 = vmatpush1.msra.mxu0 %v2232
    %2283 = vmatprep.subr.mxu0 0.0
    %2284 = vmatpush1.msra.mxu0 %v2233
    %2285 = vmatprep.subr.mxu0 0.0
    %2286 = vmatpush1.msra.mxu0 %v2234
    %2287 = vmatprep.subr.mxu0 0.0
    %2288 = vmatpush1.msra.mxu0 %v2235
    %2289 = vmatprep.subr.mxu0 0.0
    %2290 = vmatpush1.msra.mxu0 %v2236
    %2291 = vmatprep.subr.mxu0 0.0
    %2292 = vmatpush1.msra.mxu0 %v2237
    %2293 = vmatprep.subr.mxu0 0.0
    %2294 = vmatpush1.msra.mxu0 %v2238
    %2295 = vmatprep.subr.mxu0 0.0
    %2296 = vmatpush1.msra.mxu0 %v2239
    %2297 = vmatprep.subr.mxu0 0.0
    %2298 = vmatpush1.msra.mxu0 %v2240
    %2299 = vmatprep.subr.mxu0 0.0
    %2300 = vmatpush1.msra.mxu0 %v2241
    %2301 = vmatprep.subr.mxu0 0.0
    %2302 = vmatpush1.msra.mxu0 %v2242
    %2303 = vmatprep.subr.mxu0 0.0
    %2304 = vmatpush1.msra.mxu0 %v2243
    %2305 = vmatprep.subr.mxu0 0.0
    %2306 = vmatpush1.msra.mxu0 %v2244
    %2307 = vmatprep.subr.mxu0 0.0
    %2308 = vmatpush1.msra.mxu0 %v2245
    %2309 = vmatprep.subr.mxu0 0.0
    %2310 = vmatpush1.msra.mxu0 %v2246
    %2311 = vmatprep.subr.mxu0 0.0
    %2312 = vmatpush1.msra.mxu0 %v2247
    %2313 = vmatprep.subr.mxu0 0.0
    %2314 = vmatpush1.msra.mxu0 %v2248
    %2315 = vmatprep.subr.mxu0 0.0
    %2316 = vmatpush1.msra.mxu0 %v2249
    %2317 = vmatprep.subr.mxu0 0.0
    %2318 = vmatpush1.msra.mxu0 %v2250
    %2319 = vmatprep.subr.mxu0 0.0
    %2320 = vmatpush1.msra.mxu0 %v2251
    %2321 = vmatprep.subr.mxu0 0.0
    %2322 = vmatpush1.msra.mxu0 %v2252
    %2323 = vmatprep.subr.mxu0 0.0
    %2324 = vmatpush1.msra.mxu0 %v2253
    %2325 = vmatprep.mubr.f32.mxu0 %v2221
    %2326 = vmatmul.mubr.f32.gmra.mrb[0].mxu0 %v2218
    %v2327 = vpop.f32.mrb[0].mxu0
    %v2328 = vadd.f32 %v2259, %v2327
    %v2329 = vpop.f32.mrb[0].mxu0
    %2330 = vdwg.mxu0
    %v2331 = vmax.f32 %v2328, 0.0
    %v2332 = vld [vmem:[%s8] sm:$0xff]
    %v2333 = vld [vmem:[%s8 + $0x8] sm:$0xff]
    %v2334 = vld [vmem:[%s8 + $0x10] sm:$0xff]
    %v2335 = vld [vmem:[%s8 + $0x18] sm:$0xff]
    %v2336 = vld [vmem:[%s8 + $0x20] sm:$0xff]
    %v2337 = vld [vmem:[%s8 + $0x28] sm:$0xff]
    %v2338 = vld [vmem:[%s8 + $0x30] sm:$0xff]
    %v2339 = vld [vmem:[%s8 + $0x38] sm:$0xff]
    %v2340 = vld [vmem:[%s8 + $0x40] sm:$0xff]
    %v2341 = vld [vmem:[%s8 + $0x48] sm:$0xff]
    %v2342 = vld [vmem:[%s8 + $0x50] sm:$0xff]
    %v2343 = vld [vmem:[%s8 + $0x58] sm:$0xff]
    %v2344 = vld [vmem:[%s8 + $0x60] sm:$0xff]
    %v2345 = vld [vmem:[%s8 + $0x68] sm:$0xff]
    %v2346 = vld [vmem:[%s8 + $0x70] sm:$0xff]
    %v2347 = vld [vmem:[%s8 + $0x78] sm:$0xff]
    %v2348 = vld [vmem:[%s9] sm:$0x1]
    %v2350 = vlaneseq
    %v2351 = vshrl.u32 %v2350, 7
    %v2352 = vsub.s32 0, %v2351
    %v2353 = vrot.slane %v2348, %v2352
    %2355 = vmatprep.subr.mxu0 0.0
    %2356 = vmatpush1.msra.mxu0 %v2332
    %2357 = vmatprep.subr.mxu0 0.0
    %2358 = vmatpush1.msra.mxu0 %v2333
    %2359 = vmatprep.subr.mxu0 0.0
    %2360 = vmatpush1.msra.mxu0 %v2334
    %2361 = vmatprep.subr.mxu0 0.0
    %2362 = vmatpush1.msra.mxu0 %v2335
    %2363 = vmatprep.subr.mxu0 0.0
    %2364 = vmatpush1.msra.mxu0 %v2336
    %2365 = vmatprep.subr.mxu0 0.0
    %2366 = vmatpush1.msra.mxu0 %v2337
    %2367 = vmatprep.subr.mxu0 0.0
    %2368 = vmatpush1.msra.mxu0 %v2338
    %2369 = vmatprep.subr.mxu0 0.0
    %2370 = vmatpush1.msra.mxu0 %v2339
    %2371 = vmatprep.subr.mxu0 0.0
    %2372 = vmatpush1.msra.mxu0 %v2340
    %2373 = vmatprep.subr.mxu0 0.0
    %2374 = vmatpush1.msra.mxu0 %v2341
    %2375 = vmatprep.subr.mxu0 0.0
    %2376 = vmatpush1.msra.mxu0 %v2342
    %2377 = vmatprep.subr.mxu0 0.0
    %2378 = vmatpush1.msra.mxu0 %v2343
    %2379 = vmatprep.subr.mxu0 0.0
    %2380 = vmatpush1.msra.mxu0 %v2344
    %2381 = vmatprep.subr.mxu0 0.0
    %2382 = vmatpush1.msra.mxu0 %v2345
    %2383 = vmatprep.subr.mxu0 0.0
    %2384 = vmatpush1.msra.mxu0 %v2346
    %2385 = vmatprep.subr.mxu0 0.0
    %2386 = vmatpush1.msra.mxu0 %v2347
    %2387 = vmatprep.subr.mxu0 0.0
    %2388 = vmatpush1.msra.mxu0 0.0
    %2389 = vmatprep.subr.mxu0 0.0
    %2390 = vmatpush1.msra.mxu0 0.0
    %2391 = vmatprep.subr.mxu0 0.0
    %2392 = vmatpush1.msra.mxu0 0.0
    %2393 = vmatprep.subr.mxu0 0.0
    %2394 = vmatpush1.msra.mxu0 0.0
    %2395 = vmatprep.subr.mxu0 0.0
    %2396 = vmatpush1.msra.mxu0 0.0
    %2397 = vmatprep.subr.mxu0 0.0
    %2398 = vmatpush1.msra.mxu0 0.0
    %2399 = vmatprep.subr.mxu0 0.0
    %2400 = vmatpush1.msra.mxu0 0.0
    %2401 = vmatprep.subr.mxu0 0.0
    %2402 = vmatpush1.msra.mxu0 0.0
    %2403 = vmatprep.subr.mxu0 0.0
    %2404 = vmatpush1.msra.mxu0 0.0
    %2405 = vmatprep.subr.mxu0 0.0
    %2406 = vmatpush1.msra.mxu0 0.0
    %2407 = vmatprep.subr.mxu0 0.0
    %2408 = vmatpush1.msra.mxu0 0.0
    %2409 = vmatprep.subr.mxu0 0.0
    %2410 = vmatpush1.msra.mxu0 0.0
    %2411 = vmatprep.subr.mxu0 0.0
    %2412 = vmatpush1.msra.mxu0 0.0
    %2413 = vmatprep.subr.mxu0 0.0
    %2414 = vmatpush1.msra.mxu0 0.0
    %2415 = vmatprep.subr.mxu0 0.0
    %2416 = vmatpush1.msra.mxu0 0.0
    %2417 = vmatprep.subr.mxu0 0.0
    %2418 = vmatpush1.msra.mxu0 0.0
    %2419 = vmatprep.mubr.f32.mxu0 0.0
    %2420 = vmatmul.mubr.f32.gmra.mrb[0].mxu0 %v2331
    %v2421 = vpop.f32.mrb[0].mxu0
    %v2422 = vadd.f32 %v2353, %v2421
    %v2423 = vpop.f32.mrb[0].mxu0
    %2424 = vdwg.mxu0
    %v2425 = vtanh.pop %v2422
    %vm2426 = vcmask 25600
    %2427 = vst.msk [vmem:[#allocation5] sm:$0x3] %vm2426, %v2425
    // Predicated region
    $region46: #{tpu_custom_call.1} parent=1 // pred_check
      _
    $region47: #{tpu_custom_call.1} parent=1 // pred_check_branch
      %2429 = sbr.rel (0) target = $region49
    $region48: #{tpu_custom_call.1} parent=1 // pred_region
      %s2431 = ssub.s32 32, 32
      %2432 = vsyncadd [#allocation4], %s2431
      %s2434 = sshll.u32 [#allocation5], 4
      %s2435 = int_to_ptr.vmem [resolvable:$true] %s2434
      %2437 = dma.vmem_to_hbm [thread:$0]  %s2435, 32, %s10, [#allocation4]
    $region49: #{tpu_custom_call.1} parent=1 // pred_fallthru
      _
    // Predicated region
    $region50: #{tpu_custom_call.1} parent=1 // pred_check
      _
    $region51: #{tpu_custom_call.1} parent=1 // pred_check_branch
      %2439 = sbr.rel (0) target = $region53
    $region52: #{tpu_custom_call.1} parent=1 // pred_region
      %2440 = dma.done [#allocation4], 32
    $region53: #{tpu_custom_call.1} parent=1 // pred_fallthru
      _
    %2441 = vsyncpa [#allocation3], 1
    %2442 = vsyncpa [#allocation4], 1

</llo_original>
